<compile_context>
chip_gen: v7x
topology: tpu7x:2x2x1
jax: 0.10.0
libtpu: 0.0.40
codegen_flags: <defaults>
</compile_context>

<pallas_src>
import jax
import jax.numpy as jnp
from jax import lax
from jax.experimental import pallas as pl
from jax.experimental.pallas import tpu as pltpu


def add_conv1x1_kernel(a_ref, b_ref, w_ref, o_ref):
    # Fused residual-add + 1x1 conv in native NCHW layout.
    #   x   = a + b          : (C_in, HW)   (VPU, tiny)
    #   o_j = W_tile @ x     : (tn, HW)     (MXU, f32 accumulate)
    x = a_ref[0] + b_ref[0]
    acc = lax.dot_general(
        w_ref[...], x,
        dimension_numbers=(((1,), (0,)), ((), ())),
        preferred_element_type=jnp.float32,
    )
    o_ref[0] = acc.astype(o_ref.dtype)


def _default_cout_tile(c_out):
    """Per-chip C_out tile: 4 tiles on v7x (2 TCs -> 2 steps/core), 2 tiles elsewhere."""
    try:
        kind = jax.devices()[0].device_kind.lower()
    except Exception:
        kind = ""
    tn = c_out // 4 if "v7" in kind else c_out // 2
    if tn <= 0 or c_out % tn != 0 or tn % 8 != 0:
        tn = c_out
    return tn


def add_conv1x1(x529, x515, weight, *, tn=None,
                compute_dtype=jnp.bfloat16, out_dtype=jnp.float32):
    """x529, x515: (N, C_in, H, W) arrays of identical shape.
    weight: (C_out, C_in) or (C_out, C_in, 1, 1) Conv2d 1x1 weight.
    Returns NCHW (N, C_out, H, W) in out_dtype (f32 accumulation on the MXU)."""
    N, C_in, H, W = x529.shape
    if weight.ndim == 4:
        weight = weight.reshape(weight.shape[0], weight.shape[1])
    C_out = weight.shape[0]
    HW = H * W

    # bf16 operands (halves input/weight HBM bytes, native MXU path); the
    # reshapes NCHW -> (N, C_in, H*W) are contiguous and free.
    a = x529.astype(compute_dtype).reshape(N, C_in, HW)
    b = x515.astype(compute_dtype).reshape(N, C_in, HW)
    w = weight.astype(compute_dtype)

    if tn is None:
        tn = _default_cout_tile(C_out)
    if C_out % tn != 0 or tn % 8 != 0:
        tn = C_out
    n_tiles = C_out // tn

    itm_in = jnp.dtype(compute_dtype).itemsize
    itm_out = jnp.dtype(out_dtype).itemsize
    cost = pl.CostEstimate(
        flops=2 * N * C_out * C_in * HW + N * C_in * HW,
        transcendentals=0,
        bytes_accessed=(2 * N * C_in * HW * itm_in      # x529 + x515
                        + C_out * C_in * itm_in         # weight
                        + N * C_out * HW * itm_out),    # output
    )

    out = pl.pallas_call(
        add_conv1x1_kernel,
        out_shape=jax.ShapeDtypeStruct((N, C_out, HW), out_dtype),
        grid=(n_tiles, N),   # C_out tiles lead -> megacore shards the real work
        in_specs=[
            pl.BlockSpec((1, C_in, HW), lambda j, n: (n, 0, 0)),
            pl.BlockSpec((1, C_in, HW), lambda j, n: (n, 0, 0)),
            pl.BlockSpec((tn, C_in), lambda j, n: (j, 0)),
        ],
        out_specs=pl.BlockSpec((1, tn, HW), lambda j, n: (n, j, 0)),
        compiler_params=pltpu.CompilerParams(
            dimension_semantics=("parallel", "parallel")
        ),
        cost_estimate=cost,
    )(a, b, w)

    # (N, C_out, H*W) -> NCHW, free reshape.
    return out.reshape(N, C_out, H, W)


if __name__ == "__main__":
    key = jax.random.PRNGKey(0)
    k1, k2, k3 = jax.random.split(key, 3)

    # Shapes implied by the module's forward.
    N, C_in, H, W = 1, 224, 14, 14
    C_out = 1344

    x529 = jax.random.normal(k1, (N, C_in, H, W), dtype=jnp.float32)
    x515 = jax.random.normal(k2, (N, C_in, H, W), dtype=jnp.float32)
    # Deterministic synthetic Conv2d weight (C_out, C_in, 1, 1) -> (C_out, C_in)
    weight = jax.random.normal(k3, (C_out, C_in), dtype=jnp.float32) * 0.05

    out = add_conv1x1(x529, x515, weight)
    out = jax.block_until_ready(out)

    # Reference check (pure f32 JAX): 1x1 conv == einsum over channels.
    x530 = x529 + x515
    ref = jnp.einsum("nchw,oc->nohw", x530, weight)
    assert out.shape == (N, C_out, H, W), out.shape
    # bf16 operands -> loosened tolerance vs the f32 reference.
    assert jnp.allclose(out.astype(jnp.float32), ref, atol=6e-2, rtol=6e-2), \
        "mismatch vs reference"

    print("KERNEL_OK")
</pallas_src>

<mosaic_0001>
module attributes {stable_mosaic.version = 11 : i64} {
  func.func @add_conv1x1_kernel(%arg0: i32, %arg1: i32, %arg2: memref<1x224x196xbf16, #tpu.memory_space<vmem>>, %arg3: memref<1x224x196xbf16, #tpu.memory_space<vmem>>, %arg4: memref<672x224xbf16, #tpu.memory_space<vmem>>, %arg5: memref<1x672x196xf32, #tpu.memory_space<vmem>>) attributes {dimension_semantics = [#tpu.dimension_semantics<parallel>, #tpu.dimension_semantics<parallel>], iteration_bounds = array<i64: 2, 1>, scalar_prefetch = 0 : i64, scratch_operands = 0 : i64, tpu.core_type = #tpu.core_type<tc>, window_params = [{transform_indices = @transform_0, window_bounds = array<i64: 1, 224, 196>}, {transform_indices = @transform_1, window_bounds = array<i64: 1, 224, 196>}, {transform_indices = @transform_2, window_bounds = array<i64: 672, 224>}, {transform_indices = @transform_3, window_bounds = array<i64: 1, 672, 196>}]} {
    %c0 = arith.constant 0 : index
    %c0_0 = arith.constant 0 : index
    %c0_1 = arith.constant 0 : index
    %0 = vector.load %arg2[%c0, %c0_0, %c0_1] : memref<1x224x196xbf16, #tpu.memory_space<vmem>>, vector<1x224x196xbf16>
    %1 = vector.shape_cast %0 : vector<1x224x196xbf16> to vector<224x196xbf16>
    %c0_2 = arith.constant 0 : index
    %c0_3 = arith.constant 0 : index
    %c0_4 = arith.constant 0 : index
    %2 = vector.load %arg3[%c0_2, %c0_3, %c0_4] : memref<1x224x196xbf16, #tpu.memory_space<vmem>>, vector<1x224x196xbf16>
    %3 = vector.shape_cast %2 : vector<1x224x196xbf16> to vector<224x196xbf16>
    %4 = arith.addf %1, %3 : vector<224x196xbf16>
    %c0_5 = arith.constant 0 : index
    %c0_6 = arith.constant 0 : index
    %5 = vector.load %arg4[%c0_5, %c0_6] : memref<672x224xbf16, #tpu.memory_space<vmem>>, vector<672x224xbf16>
    %cst = arith.constant dense<0.000000e+00> : vector<672x196xf32>
    %6 = tpu.matmul %5, %4, %cst {dimension_numbers = #tpu.dot_dimension_numbers<[1], [0], [0], [1], [0, 0, 1, 1], [], []>} : vector<672x224xbf16>, vector<224x196xbf16>, vector<672x196xf32> -> vector<672x196xf32>
    %c0_7 = arith.constant 0 : index
    %c0_8 = arith.constant 0 : index
    %c0_9 = arith.constant 0 : index
    %7 = vector.load %arg5[%c0_7, %c0_8, %c0_9] : memref<1x672x196xf32, #tpu.memory_space<vmem>>, vector<1x672x196xf32>
    %8 = vector.shape_cast %7 : vector<1x672x196xf32> to vector<672x196xf32>
    %9 = vector.shape_cast %6 : vector<672x196xf32> to vector<1x672x196xf32>
    tpu.vector_store %arg5[%c0_7, %c0_8, %c0_9], %9 {strides = array<i32>} : memref<1x672x196xf32, #tpu.memory_space<vmem>>, vector<1x672x196xf32>,
    return
  }
  func.func @transform_0(%arg0: i32, %arg1: i32) -> (i32, i32, i32) {
    %c0_i32 = arith.constant 0 : i32
    %c0_i32_0 = arith.constant 0 : i32
    %c0_i32_1 = arith.constant 0 : i32
    return %arg1, %c0_i32, %c0_i32_0 : i32, i32, i32
  }
  func.func @transform_1(%arg0: i32, %arg1: i32) -> (i32, i32, i32) {
    %c0_i32 = arith.constant 0 : i32
    %c0_i32_0 = arith.constant 0 : i32
    %c0_i32_1 = arith.constant 0 : i32
    return %arg1, %c0_i32, %c0_i32_0 : i32, i32, i32
  }
  func.func @transform_2(%arg0: i32, %arg1: i32) -> (i32, i32) {
    %c0_i32 = arith.constant 0 : i32
    %c0_i32_0 = arith.constant 0 : i32
    return %arg0, %c0_i32 : i32, i32
  }
  func.func @transform_3(%arg0: i32, %arg1: i32) -> (i32, i32, i32) {
    %c0_i32 = arith.constant 0 : i32
    %c0_i32_0 = arith.constant 0 : i32
    return %arg1, %arg0, %c0_i32 : i32, i32, i32
  }
}

</mosaic_0001>

<llo_original>
// kernel: tpu_custom_call.1
$region0: #{tpu_custom_call.1}
  #allocation0 [shape = 'u32[]', space=smem, size = 0x4, offset = 0x4, fixed_abs, tag = 'smem constant byte address 0x4 - core index']
  #allocation1 [shape = 'u32[144,128]{1,0:T(1,128)}', space=vmem, size = 0x12000, scoped, tag = 'internal scratch']
  %s0 = inlined_call_operand.vmem [shape: bf16[1,224,196], index: 0, kind: input, shape index: {}]
  %s1 = inlined_call_operand.vmem [shape: bf16[1,224,196], index: 1, kind: input, shape index: {}]
  %s2 = inlined_call_operand.vmem [shape: bf16[1344,224], index: 2, kind: input, shape index: {}]
  %s3 = inlined_call_operand.vmem [shape: f32[1,1344,196], index: 3, kind: output, shape index: {}]
  %s4 = sld [smem:[#allocation0]]
  $region45: #{tpu_custom_call.1} parent=0
    _
  %s6 = ssub.s32 1, %s4
  %s7 = scalar_select 0, %s6, %s4
  loop: start=0, step=1, limit=4
  $region2: #{tpu_custom_call.1} parent=0 // loop_pre_header
    _
  $region3: #{tpu_custom_call.1} parent=0 // loop_header
    %s9 = sphi 0, %s13
    %p10 = scmp.ge.s32.totalorder %s9, 4
    %s16 = sphi 0, %s28
    %s17 = sphi 0, %s24
    %s18 = sphi 0, %s16
    %s19 = sphi 0, %s17
    %s20 = sphi 0, %s18
    %s21 = sphi 0, %s19
    %s31 = sphi 0, %s33
    %s34 = sphi 0, %s31
    %s35 = sphi 0, %s34
    %s51 = sphi 0, %s35
    %s57 = sphi 0, %s59
    %s60 = sphi 0, %s57
    %s61 = sphi 0, %s60
    %s77 = sphi 0, %s61
    %s83 = sphi 0, %s85
    %s86 = sphi 0, %s83
    %s87 = sphi 0, %s86
    %s103 = sphi 0, %s87
    %s111 = sphi 0, %s113
    %s114 = sphi 0, %s111
    %s115 = sphi 0, %s114
    %s131 = sphi 0, %s115
  $region4: #{tpu_custom_call.1} parent=0 // loop_header_branch
    %12 = sbr.rel (%p10) target = $region8
  $region5: #{tpu_custom_call.1} parent=0 // loop_body
    %s14 = ssub.s32 %s9, 1
    %s15 = ssub.s32 %s9, 2
    %s22 = sadd.s32 1, %s17
    %p23 = scmp.ge.s32.totalorder %s22, 1
    %s24 = scalar_select %p23, 0, %s22
    %s25 = sadd.s32 1, %s16
    %s26 = scalar_select %p23, %s25, %s16
    %p27 = scmp.ge.s32.totalorder %s26, 2
    %s28 = scalar_select %p27, 0, %s26
    %s29 = ssub.s32 %s17, %s24
    %p30 = scmp.eq.s32.totalorder %s29, 0
    %s32 = sadd.s32 %s31, 1
    %s33 = scalar_select %p30, %s31, %s32
    %p36 = pneg %p30
    %p37 = scmp.eq.s32.totalorder %s9, 1
    %p38 = por %p36, %p37
    %p39 = scmp.ne.s32.totalorder %s31, %s34
    %p40 = scmp.eq.s32.totalorder %s9, 0
    %p41 = por %p39, %p40
    %p42 = scmp.ne.s32.totalorder %s31, %s34
    %p43 = scmp.eq.s32.totalorder %s14, 1
    %p44 = por %p42, %p43
    %p45 = scmp.ne.s32.totalorder %s34, %s35
    %p46 = scmp.eq.s32.totalorder %s14, 0
    %p47 = por %p45, %p46
    %p48 = scmp.ne.s32.totalorder %s34, %s35
    %p49 = scmp.eq.s32.totalorder %s15, 1
    %p50 = por %p48, %p49
    %p52 = scmp.ne.s32.totalorder %s35, %s51
    %p53 = scmp.eq.s32.totalorder %s15, 0
    %p54 = por %p52, %p53
    %s55 = ssub.s32 %s17, %s24
    %p56 = scmp.eq.s32.totalorder %s55, 0
    %s58 = sadd.s32 %s57, 1
    %s59 = scalar_select %p56, %s57, %s58
    %p62 = pneg %p56
    %p63 = scmp.eq.s32.totalorder %s9, 1
    %p64 = por %p62, %p63
    %p65 = scmp.ne.s32.totalorder %s57, %s60
    %p66 = scmp.eq.s32.totalorder %s9, 0
    %p67 = por %p65, %p66
    %p68 = scmp.ne.s32.totalorder %s57, %s60
    %p69 = scmp.eq.s32.totalorder %s14, 1
    %p70 = por %p68, %p69
    %p71 = scmp.ne.s32.totalorder %s60, %s61
    %p72 = scmp.eq.s32.totalorder %s14, 0
    %p73 = por %p71, %p72
    %p74 = scmp.ne.s32.totalorder %s60, %s61
    %p75 = scmp.eq.s32.totalorder %s15, 1
    %p76 = por %p74, %p75
    %p78 = scmp.ne.s32.totalorder %s61, %s77
    %p79 = scmp.eq.s32.totalorder %s15, 0
    %p80 = por %p78, %p79
    %s81 = ssub.s32 %s16, %s28
    %p82 = scmp.eq.s32.totalorder %s81, 0
    %s84 = sadd.s32 %s83, 1
    %s85 = scalar_select %p82, %s83, %s84
    %p88 = pneg %p82
    %p89 = scmp.eq.s32.totalorder %s9, 1
    %p90 = por %p88, %p89
    %p91 = scmp.ne.s32.totalorder %s83, %s86
    %p92 = scmp.eq.s32.totalorder %s9, 0
    %p93 = por %p91, %p92
    %p94 = scmp.ne.s32.totalorder %s83, %s86
    %p95 = scmp.eq.s32.totalorder %s14, 1
    %p96 = por %p94, %p95
    %p97 = scmp.ne.s32.totalorder %s86, %s87
    %p98 = scmp.eq.s32.totalorder %s14, 0
    %p99 = por %p97, %p98
    %p100 = scmp.ne.s32.totalorder %s86, %s87
    %p101 = scmp.eq.s32.totalorder %s15, 1
    %p102 = por %p100, %p101
    %p104 = scmp.ne.s32.totalorder %s87, %s103
    %p105 = scmp.eq.s32.totalorder %s15, 0
    %p106 = por %p104, %p105
    %s107 = ssub.s32 %s17, %s24
    %s108 = ssub.s32 %s16, %s28
    %s109 = sor.u32 %s107, %s108
    %p110 = scmp.eq.s32.totalorder %s109, 0
    %s112 = sadd.s32 %s111, 1
    %s113 = scalar_select %p110, %s111, %s112
    %p116 = pneg %p110
    %p117 = scmp.eq.s32.totalorder %s9, 1
    %p118 = por %p116, %p117
    %p119 = scmp.ne.s32.totalorder %s111, %s114
    %p120 = scmp.eq.s32.totalorder %s9, 0
    %p121 = por %p119, %p120
    %p122 = scmp.ne.s32.totalorder %s111, %s114
    %p123 = scmp.eq.s32.totalorder %s14, 1
    %p124 = por %p122, %p123
    %p125 = scmp.ne.s32.totalorder %s114, %s115
    %p126 = scmp.eq.s32.totalorder %s14, 0
    %p127 = por %p125, %p126
    %p128 = scmp.ne.s32.totalorder %s114, %s115
    %p129 = scmp.eq.s32.totalorder %s15, 1
    %p130 = por %p128, %p129
    %p132 = scmp.ne.s32.totalorder %s115, %s131
    %p133 = scmp.eq.s32.totalorder %s15, 0
    %p134 = por %p132, %p133
    %p135 = scmp.le.s32.totalorder 1, %s9
    %p136 = scmp.lt.s32.totalorder %s9, 3
    %p137 = pnand %p135, %p136
    %p138 = pneg %p137
    // Predicated region
    $region9: #{tpu_custom_call.1} parent=5 // pred_check
      _
    $region10: #{tpu_custom_call.1} parent=5 // pred_check_branch
      %140 = sbr.rel (%p137) target = $region12
    $region11: #{tpu_custom_call.1} parent=5 // pred_region
      %s141 = ssub.s32 %s9, 1
      // Predicated region
      $region13: #{tpu_custom_call.1} parent=11 // pred_check
        %p142 = pneg %p47
      $region14: #{tpu_custom_call.1} parent=11 // pred_check_branch
        %144 = sbr.rel (%p142) target = $region16
      $region15: #{tpu_custom_call.1} parent=11 // pred_region
        %p145 = scmp.lt.s32.totalorder %s19, 0
        %s146 = scalar_select %p145, %s19, 0
        %s147 = smul.addr %s146, 56
        %s148 = smul.addr %s147, 4
        %s149 = scalar_lea.vmem %s0, %s148
      $region16: #{tpu_custom_call.1} parent=11 // pred_fallthru
        _
      // Predicated region
      $region17: #{tpu_custom_call.1} parent=11 // pred_check
        %p150 = pneg %p73
      $region18: #{tpu_custom_call.1} parent=11 // pred_check_branch
        %152 = sbr.rel (%p150) target = $region20
      $region19: #{tpu_custom_call.1} parent=11 // pred_region
        %p153 = scmp.lt.s32.totalorder %s19, 0
        %s154 = scalar_select %p153, %s19, 0
        %s155 = smul.addr %s154, 56
        %s156 = smul.addr %s155, 4
        %s157 = scalar_lea.vmem %s1, %s156
      $region20: #{tpu_custom_call.1} parent=11 // pred_fallthru
        _
    $region12: #{tpu_custom_call.1} parent=5 // pred_fallthru
      _
    %p158 = scmp.lt.s32.totalorder %s9, 2
    // Predicated region
    $region21: #{tpu_custom_call.1} parent=5 // pred_check
      %p159 = pneg %p158
    $region22: #{tpu_custom_call.1} parent=5 // pred_check_branch
      %161 = sbr.rel (%p159) target = $region24
    $region23: #{tpu_custom_call.1} parent=5 // pred_region
      // Predicated region
      $region25: #{tpu_custom_call.1} parent=23 // pred_check
        %p162 = pneg %p93
      $region26: #{tpu_custom_call.1} parent=23 // pred_check_branch
        %164 = sbr.rel (%p162) target = $region28
      $region27: #{tpu_custom_call.1} parent=23 // pred_region
        %s165 = smul.u32 84, %s16
        %p166 = scmp.lt.s32.totalorder %s165, 167
        %s167 = scalar_select %p166, %s165, 167
        %s168 = smul.addr %s167, 2
        %s169 = smul.addr %s168, 4
        %s170 = scalar_lea.vmem %s2, %s169
        %s171 = smul.u32 84, %s16
      $region28: #{tpu_custom_call.1} parent=23 // pred_fallthru
        _
    $region24: #{tpu_custom_call.1} parent=5 // pred_fallthru
      _
    %p172 = scmp.le.s32.totalorder 1, %s9
    %p173 = scmp.lt.s32.totalorder %s9, 3
    %p174 = pnand %p172, %p173
    %p175 = pneg %p174
    // Predicated region
    $region29: #{tpu_custom_call.1} parent=5 // pred_check
      _
    $region30: #{tpu_custom_call.1} parent=5 // pred_check_branch
      %177 = sbr.rel (%p174) target = $region32
    $region31: #{tpu_custom_call.1} parent=5 // pred_region
      %s178 = ssub.s32 %s9, 1
      %p179 = scmp.lt.s32.totalorder %s19, 0
      %s180 = scalar_select %p179, %s19, 0
      %s181 = smul.addr %s180, 56
      %s182 = smul.addr %s181, 4
      %s183 = scalar_lea.vmem %s0, %s182
      %p184 = pneg %p47
      %p185 = pneg %p44
      %p186 = scmp.lt.s32.totalorder %s19, 0
      %s187 = scalar_select %p186, %s19, 0
      %s188 = smul.addr %s187, 56
      %s189 = smul.addr %s188, 4
      %s190 = scalar_lea.vmem %s1, %s189
      %p191 = pneg %p73
      %p192 = pneg %p70
      %s193 = smul.u32 84, %s18
      %p194 = scmp.lt.s32.totalorder %s193, 167
      %s195 = scalar_select %p194, %s193, 167
      %s196 = smul.addr %s195, 2
      %s197 = smul.addr %s196, 4
      %s198 = scalar_lea.vmem %s2, %s197
      %p199 = pneg %p99
      %p200 = pneg %p96
      %p201 = pneg %p127
      %p202 = pneg %p124
      %s203 = smul.u32 84, %s18
      %p204 = scmp.lt.s32.totalorder %s19, 0
      %s205 = scalar_select %p204, %s19, 0
      %p206 = scmp.lt.s32.totalorder %s203, 167
      %s207 = scalar_select %p206, %s203, 167
      %s208 = smul.addr %s207, 2
      %s209 = smul.addr %s205, 336
      %s210 = sadd.s32 %s208, %s209
      %s211 = smul.addr %s210, 8
      %s212 = scalar_lea.vmem %s3, %s211
      %p213 = scmp.lt.s32.totalorder %s19, 0
      %s214 = scalar_select %p213, %s19, 0
      %s215 = smul.addr %s214, 56
      %s216 = smul.addr %s215, 4
      %s217 = scalar_lea.vmem %s0, %s216
      %p218 = scmp.lt.s32.totalorder %s19, 0
      %s219 = scalar_select %p218, %s19, 0
      %s220 = smul.addr %s219, 56
      %s221 = smul.addr %s220, 4
      %s222 = scalar_lea.vmem %s1, %s221
      %s223 = smul.u32 84, %s18
      %p224 = scmp.lt.s32.totalorder %s223, 167
      %s225 = scalar_select %p224, %s223, 167
      %s226 = smul.addr %s225, 2
      %s227 = smul.addr %s226, 4
      %s228 = scalar_lea.vmem %s2, %s227
      %s229 = smul.u32 84, %s18
      %s230 = smul.u32 84, %s18
      %p231 = scmp.lt.s32.totalorder %s19, 0
      %s232 = scalar_select %p231, %s19, 0
      %p233 = scmp.lt.s32.totalorder %s230, 167
      %s234 = scalar_select %p233, %s230, 167
      %s235 = smul.addr %s234, 2
      %s236 = smul.addr %s232, 336
      %s237 = sadd.s32 %s235, %s236
      %s238 = smul.addr %s237, 8
      %s239 = scalar_lea.vmem %s3, %s238
      %s240 = smul.u32 84, %s18
      %v242 = vld [vmem:[%s217] sm:$0xff]
      %v243 = vld [vmem:[%s217 + $0x8] sm:$0xff]
      %v244 = vld [vmem:[%s217 + $0x10] sm:$0xff]
      %v245 = vld [vmem:[%s217 + $0x18] sm:$0xff]
      %v246 = vld [vmem:[%s217 + $0x20] sm:$0xff]
      %v247 = vld [vmem:[%s217 + $0x28] sm:$0xff]
      %v248 = vld [vmem:[%s217 + $0x30] sm:$0xff]
      %v249 = vld [vmem:[%s217 + $0x38] sm:$0xff]
      %v250 = vld [vmem:[%s217 + $0x40] sm:$0xff]
      %v251 = vld [vmem:[%s217 + $0x48] sm:$0xff]
      %v252 = vld [vmem:[%s217 + $0x50] sm:$0xff]
      %v253 = vld [vmem:[%s217 + $0x58] sm:$0xff]
      %v254 = vld [vmem:[%s217 + $0x60] sm:$0xff]
      %v255 = vld [vmem:[%s217 + $0x68] sm:$0xff]
      %v256 = vld [vmem:[%s217 + $0x70] sm:$0xff]
      %v257 = vld [vmem:[%s217 + $0x78] sm:$0xff]
      %v258 = vld [vmem:[%s217 + $0x80] sm:$0xff]
      %v259 = vld [vmem:[%s217 + $0x88] sm:$0xff]
      %v260 = vld [vmem:[%s217 + $0x90] sm:$0xff]
      %v261 = vld [vmem:[%s217 + $0x98] sm:$0xff]
      %v262 = vld [vmem:[%s217 + $0xa0] sm:$0xff]
      %v263 = vld [vmem:[%s217 + $0xa8] sm:$0xff]
      %v264 = vld [vmem:[%s217 + $0xb0] sm:$0xff]
      %v265 = vld [vmem:[%s217 + $0xb8] sm:$0xff]
      %v266 = vld [vmem:[%s217 + $0xc0] sm:$0xff]
      %v267 = vld [vmem:[%s217 + $0xc8] sm:$0xff]
      %v268 = vld [vmem:[%s217 + $0xd0] sm:$0xff]
      %v269 = vld [vmem:[%s217 + $0xd8] sm:$0xff]
      %v270 = vld [vmem:[%s222] sm:$0xff]
      %v271 = vld [vmem:[%s222 + $0x8] sm:$0xff]
      %v272 = vld [vmem:[%s222 + $0x10] sm:$0xff]
      %v273 = vld [vmem:[%s222 + $0x18] sm:$0xff]
      %v274 = vld [vmem:[%s222 + $0x20] sm:$0xff]
      %v275 = vld [vmem:[%s222 + $0x28] sm:$0xff]
      %v276 = vld [vmem:[%s222 + $0x30] sm:$0xff]
      %v277 = vld [vmem:[%s222 + $0x38] sm:$0xff]
      %v278 = vld [vmem:[%s222 + $0x40] sm:$0xff]
      %v279 = vld [vmem:[%s222 + $0x48] sm:$0xff]
      %v280 = vld [vmem:[%s222 + $0x50] sm:$0xff]
      %v281 = vld [vmem:[%s222 + $0x58] sm:$0xff]
      %v282 = vld [vmem:[%s222 + $0x60] sm:$0xff]
      %v283 = vld [vmem:[%s222 + $0x68] sm:$0xff]
      %v284 = vld [vmem:[%s222 + $0x70] sm:$0xff]
      %v285 = vld [vmem:[%s222 + $0x78] sm:$0xff]
      %v286 = vld [vmem:[%s222 + $0x80] sm:$0xff]
      %v287 = vld [vmem:[%s222 + $0x88] sm:$0xff]
      %v288 = vld [vmem:[%s222 + $0x90] sm:$0xff]
      %v289 = vld [vmem:[%s222 + $0x98] sm:$0xff]
      %v290 = vld [vmem:[%s222 + $0xa0] sm:$0xff]
      %v291 = vld [vmem:[%s222 + $0xa8] sm:$0xff]
      %v292 = vld [vmem:[%s222 + $0xb0] sm:$0xff]
      %v293 = vld [vmem:[%s222 + $0xb8] sm:$0xff]
      %v294 = vld [vmem:[%s222 + $0xc0] sm:$0xff]
      %v295 = vld [vmem:[%s222 + $0xc8] sm:$0xff]
      %v296 = vld [vmem:[%s222 + $0xd0] sm:$0xff]
      %v297 = vld [vmem:[%s222 + $0xd8] sm:$0xff]
      %v298 = vadd.bf16 %v242, %v270
      %v299 = vadd.bf16 %v243, %v271
      %v300 = vadd.bf16 %v244, %v272
      %v301 = vadd.bf16 %v245, %v273
      %v302 = vadd.bf16 %v246, %v274
      %v303 = vadd.bf16 %v247, %v275
      %v304 = vadd.bf16 %v248, %v276
      %v305 = vadd.bf16 %v249, %v277
      %v306 = vadd.bf16 %v250, %v278
      %v307 = vadd.bf16 %v251, %v279
      %v308 = vadd.bf16 %v252, %v280
      %v309 = vadd.bf16 %v253, %v281
      %v310 = vadd.bf16 %v254, %v282
      %v311 = vadd.bf16 %v255, %v283
      %v312 = vadd.bf16 %v256, %v284
      %v313 = vadd.bf16 %v257, %v285
      %v314 = vadd.bf16 %v258, %v286
      %v315 = vadd.bf16 %v259, %v287
      %v316 = vadd.bf16 %v260, %v288
      %v317 = vadd.bf16 %v261, %v289
      %v318 = vadd.bf16 %v262, %v290
      %v319 = vadd.bf16 %v263, %v291
      %v320 = vadd.bf16 %v264, %v292
      %v321 = vadd.bf16 %v265, %v293
      %v322 = vadd.bf16 %v266, %v294
      %v323 = vadd.bf16 %v267, %v295
      %v324 = vadd.bf16 %v268, %v296
      %v325 = vadd.bf16 %v269, %v297
      %v326 = vld [vmem:[%s228] sm:$0xff]
      %v327 = vld [vmem:[%s228 + $0x8] sm:$0xff]
      %v328 = vld [vmem:[%s228 + $0x10] sm:$0xff]
      %v329 = vld [vmem:[%s228 + $0x18] sm:$0xff]
      %v330 = vld [vmem:[%s228 + $0x20] sm:$0xff]
      %v331 = vld [vmem:[%s228 + $0x28] sm:$0xff]
      %v332 = vld [vmem:[%s228 + $0x30] sm:$0xff]
      %v333 = vld [vmem:[%s228 + $0x38] sm:$0xff]
      %v334 = vld [vmem:[%s228 + $0x40] sm:$0xff]
      %v335 = vld [vmem:[%s228 + $0x48] sm:$0xff]
      %v336 = vld [vmem:[%s228 + $0x50] sm:$0xff]
      %v337 = vld [vmem:[%s228 + $0x58] sm:$0xff]
      %v338 = vld [vmem:[%s228 + $0x60] sm:$0xff]
      %v339 = vld [vmem:[%s228 + $0x68] sm:$0xff]
      %v340 = vld [vmem:[%s228 + $0x70] sm:$0xff]
      %v341 = vld [vmem:[%s228 + $0x78] sm:$0xff]
      %v342 = vld [vmem:[%s228 + $0x80] sm:$0xff]
      %v343 = vld [vmem:[%s228 + $0x88] sm:$0xff]
      %v344 = vld [vmem:[%s228 + $0x90] sm:$0xff]
      %v345 = vld [vmem:[%s228 + $0x98] sm:$0xff]
      %v346 = vld [vmem:[%s228 + $0xa0] sm:$0xff]
      %v347 = vld [vmem:[%s228 + $0xa8] sm:$0xff]
      %v348 = vld [vmem:[%s228 + $0xb0] sm:$0xff]
      %v349 = vld [vmem:[%s228 + $0xb8] sm:$0xff]
      %v350 = vld [vmem:[%s228 + $0xc0] sm:$0xff]
      %v351 = vld [vmem:[%s228 + $0xc8] sm:$0xff]
      %v352 = vld [vmem:[%s228 + $0xd0] sm:$0xff]
      %v353 = vld [vmem:[%s228 + $0xd8] sm:$0xff]
      %v354 = vld [vmem:[%s228 + $0xe0] sm:$0xff]
      %v355 = vld [vmem:[%s228 + $0xe8] sm:$0xff]
      %v356 = vld [vmem:[%s228 + $0xf0] sm:$0xff]
      %v357 = vld [vmem:[%s228 + $0xf8] sm:$0xff]
      %v358 = vld [vmem:[%s228 + $0x100] sm:$0xff]
      %v359 = vld [vmem:[%s228 + $0x108] sm:$0xff]
      %v360 = vld [vmem:[%s228 + $0x110] sm:$0xff]
      %v361 = vld [vmem:[%s228 + $0x118] sm:$0xff]
      %v362 = vld [vmem:[%s228 + $0x120] sm:$0xff]
      %v363 = vld [vmem:[%s228 + $0x128] sm:$0xff]
      %v364 = vld [vmem:[%s228 + $0x130] sm:$0xff]
      %v365 = vld [vmem:[%s228 + $0x138] sm:$0xff]
      %v366 = vld [vmem:[%s228 + $0x140] sm:$0xff]
      %v367 = vld [vmem:[%s228 + $0x148] sm:$0xff]
      %v368 = vld [vmem:[%s228 + $0x150] sm:$0xff]
      %v369 = vld [vmem:[%s228 + $0x158] sm:$0xff]
      %v370 = vld [vmem:[%s228 + $0x160] sm:$0xff]
      %v371 = vld [vmem:[%s228 + $0x168] sm:$0xff]
      %v372 = vld [vmem:[%s228 + $0x170] sm:$0xff]
      %v373 = vld [vmem:[%s228 + $0x178] sm:$0xff]
      %v374 = vld [vmem:[%s228 + $0x180] sm:$0xff]
      %v375 = vld [vmem:[%s228 + $0x188] sm:$0xff]
      %v376 = vld [vmem:[%s228 + $0x190] sm:$0xff]
      %v377 = vld [vmem:[%s228 + $0x198] sm:$0xff]
      %v378 = vld [vmem:[%s228 + $0x1a0] sm:$0xff]
      %v379 = vld [vmem:[%s228 + $0x1a8] sm:$0xff]
      %v380 = vld [vmem:[%s228 + $0x1b0] sm:$0xff]
      %v381 = vld [vmem:[%s228 + $0x1b8] sm:$0xff]
      %v382 = vld [vmem:[%s228 + $0x1c0] sm:$0xff]
      %v383 = vld [vmem:[%s228 + $0x1c8] sm:$0xff]
      %v384 = vld [vmem:[%s228 + $0x1d0] sm:$0xff]
      %v385 = vld [vmem:[%s228 + $0x1d8] sm:$0xff]
      %v386 = vld [vmem:[%s228 + $0x1e0] sm:$0xff]
      %v387 = vld [vmem:[%s228 + $0x1e8] sm:$0xff]
      %v388 = vld [vmem:[%s228 + $0x1f0] sm:$0xff]
      %v389 = vld [vmem:[%s228 + $0x1f8] sm:$0xff]
      %v390 = vld [vmem:[%s228 + $0x200] sm:$0xff]
      %v391 = vld [vmem:[%s228 + $0x208] sm:$0xff]
      %v392 = vld [vmem:[%s228 + $0x210] sm:$0xff]
      %v393 = vld [vmem:[%s228 + $0x218] sm:$0xff]
      %v394 = vld [vmem:[%s228 + $0x220] sm:$0xff]
      %v395 = vld [vmem:[%s228 + $0x228] sm:$0xff]
      %v396 = vld [vmem:[%s228 + $0x230] sm:$0xff]
      %v397 = vld [vmem:[%s228 + $0x238] sm:$0xff]
      %v398 = vld [vmem:[%s228 + $0x240] sm:$0xff]
      %v399 = vld [vmem:[%s228 + $0x248] sm:$0xff]
      %v400 = vld [vmem:[%s228 + $0x250] sm:$0xff]
      %v401 = vld [vmem:[%s228 + $0x258] sm:$0xff]
      %v402 = vld [vmem:[%s228 + $0x260] sm:$0xff]
      %v403 = vld [vmem:[%s228 + $0x268] sm:$0xff]
      %v404 = vld [vmem:[%s228 + $0x270] sm:$0xff]
      %v405 = vld [vmem:[%s228 + $0x278] sm:$0xff]
      %v406 = vld [vmem:[%s228 + $0x280] sm:$0xff]
      %v407 = vld [vmem:[%s228 + $0x288] sm:$0xff]
      %v408 = vld [vmem:[%s228 + $0x290] sm:$0xff]
      %v409 = vld [vmem:[%s228 + $0x298] sm:$0xff]
      %v494 = vunpack.c.l.b16 %v326
      %v495 = vunpack.c.h.b16 %v326
      %v496 = vunpack.c.l.b16 %v327
      %v497 = vunpack.c.h.b16 %v327
      %v498 = vunpack.c.l.b16 %v328
      %v499 = vunpack.c.h.b16 %v328
      %v500 = vunpack.c.l.b16 %v329
      %v501 = vunpack.c.h.b16 %v329
      %v502 = vunpack.c.l.b16 %v330
      %v503 = vunpack.c.h.b16 %v330
      %v504 = vunpack.c.l.b16 %v331
      %v505 = vunpack.c.h.b16 %v331
      %v506 = vunpack.c.l.b16 %v332
      %v507 = vunpack.c.h.b16 %v332
      %v508 = vunpack.c.l.b16 %v333
      %v509 = vunpack.c.h.b16 %v333
      %v510 = vunpack.c.l.b16 %v334
      %v511 = vunpack.c.h.b16 %v334
      %v512 = vunpack.c.l.b16 %v335
      %v513 = vunpack.c.h.b16 %v335
      %v514 = vunpack.c.l.b16 %v336
      %v515 = vunpack.c.h.b16 %v336
      %v516 = vunpack.c.l.b16 %v337
      %v517 = vunpack.c.h.b16 %v337
      %v518 = vunpack.c.l.b16 %v338
      %v519 = vunpack.c.h.b16 %v338
      %v520 = vunpack.c.l.b16 %v339
      %v521 = vunpack.c.h.b16 %v339
      %v522 = vunpack.c.l.b16 %v340
      %v523 = vunpack.c.h.b16 %v340
      %v524 = vunpack.c.l.b16 %v341
      %v525 = vunpack.c.h.b16 %v341
      %v526 = vunpack.c.l.b16 %v342
      %v527 = vunpack.c.h.b16 %v342
      %v528 = vunpack.c.l.b16 %v343
      %v529 = vunpack.c.h.b16 %v343
      %v530 = vunpack.c.l.b16 %v344
      %v531 = vunpack.c.h.b16 %v344
      %v532 = vunpack.c.l.b16 %v345
      %v533 = vunpack.c.h.b16 %v345
      %v534 = vunpack.c.l.b16 %v346
      %v535 = vunpack.c.h.b16 %v346
      %v536 = vunpack.c.l.b16 %v347
      %v537 = vunpack.c.h.b16 %v347
      %v538 = vunpack.c.l.b16 %v348
      %v539 = vunpack.c.h.b16 %v348
      %v540 = vunpack.c.l.b16 %v349
      %v541 = vunpack.c.h.b16 %v349
      %v542 = vunpack.c.l.b16 %v350
      %v543 = vunpack.c.h.b16 %v350
      %v544 = vunpack.c.l.b16 %v351
      %v545 = vunpack.c.h.b16 %v351
      %v546 = vunpack.c.l.b16 %v352
      %v547 = vunpack.c.h.b16 %v352
      %v548 = vunpack.c.l.b16 %v353
      %v549 = vunpack.c.h.b16 %v353
      %v550 = vunpack.c.l.b16 %v354
      %v551 = vunpack.c.h.b16 %v354
      %v552 = vunpack.c.l.b16 %v355
      %v553 = vunpack.c.h.b16 %v355
      %v554 = vunpack.c.l.b16 %v356
      %v555 = vunpack.c.h.b16 %v356
      %v556 = vunpack.c.l.b16 %v357
      %v557 = vunpack.c.h.b16 %v357
      %v558 = vunpack.c.l.b16 %v358
      %v559 = vunpack.c.h.b16 %v358
      %v560 = vunpack.c.l.b16 %v359
      %v561 = vunpack.c.h.b16 %v359
      %v562 = vunpack.c.l.b16 %v360
      %v563 = vunpack.c.h.b16 %v360
      %v564 = vunpack.c.l.b16 %v361
      %v565 = vunpack.c.h.b16 %v361
      %v566 = vunpack.c.l.b16 %v362
      %v567 = vunpack.c.h.b16 %v362
      %v568 = vunpack.c.l.b16 %v363
      %v569 = vunpack.c.h.b16 %v363
      %v570 = vunpack.c.l.b16 %v364
      %v571 = vunpack.c.h.b16 %v364
      %v572 = vunpack.c.l.b16 %v365
      %v573 = vunpack.c.h.b16 %v365
      %v574 = vunpack.c.l.b16 %v366
      %v575 = vunpack.c.h.b16 %v366
      %v576 = vunpack.c.l.b16 %v367
      %v577 = vunpack.c.h.b16 %v367
      %v578 = vunpack.c.l.b16 %v368
      %v579 = vunpack.c.h.b16 %v368
      %v580 = vunpack.c.l.b16 %v369
      %v581 = vunpack.c.h.b16 %v369
      %v582 = vunpack.c.l.b16 %v370
      %v583 = vunpack.c.h.b16 %v370
      %v584 = vunpack.c.l.b16 %v371
      %v585 = vunpack.c.h.b16 %v371
      %v586 = vunpack.c.l.b16 %v372
      %v587 = vunpack.c.h.b16 %v372
      %v588 = vunpack.c.l.b16 %v373
      %v589 = vunpack.c.h.b16 %v373
      %v590 = vunpack.c.l.b16 %v374
      %v591 = vunpack.c.h.b16 %v374
      %v592 = vunpack.c.l.b16 %v375
      %v593 = vunpack.c.h.b16 %v375
      %v594 = vunpack.c.l.b16 %v376
      %v595 = vunpack.c.h.b16 %v376
      %v596 = vunpack.c.l.b16 %v377
      %v597 = vunpack.c.h.b16 %v377
      %v598 = vunpack.c.l.b16 %v378
      %v599 = vunpack.c.h.b16 %v378
      %v600 = vunpack.c.l.b16 %v379
      %v601 = vunpack.c.h.b16 %v379
      %v602 = vunpack.c.l.b16 %v380
      %v603 = vunpack.c.h.b16 %v380
      %v604 = vunpack.c.l.b16 %v381
      %v605 = vunpack.c.h.b16 %v381
      %v606 = vunpack.c.l.b16 %v382
      %v607 = vunpack.c.h.b16 %v382
      %v608 = vunpack.c.l.b16 %v383
      %v609 = vunpack.c.h.b16 %v383
      %v610 = vunpack.c.l.b16 %v384
      %v611 = vunpack.c.h.b16 %v384
      %v612 = vunpack.c.l.b16 %v385
      %v613 = vunpack.c.h.b16 %v385
      %v614 = vunpack.c.l.b16 %v386
      %v615 = vunpack.c.h.b16 %v386
      %v616 = vunpack.c.l.b16 %v387
      %v617 = vunpack.c.h.b16 %v387
      %v618 = vunpack.c.l.b16 %v388
      %v619 = vunpack.c.h.b16 %v388
      %v620 = vunpack.c.l.b16 %v389
      %v621 = vunpack.c.h.b16 %v389
      %v622 = vunpack.c.l.b16 %v390
      %v623 = vunpack.c.h.b16 %v390
      %v624 = vunpack.c.l.b16 %v391
      %v625 = vunpack.c.h.b16 %v391
      %v626 = vunpack.c.l.b16 %v392
      %v627 = vunpack.c.h.b16 %v392
      %v628 = vunpack.c.l.b16 %v393
      %v629 = vunpack.c.h.b16 %v393
      %v630 = vunpack.c.l.b16 %v394
      %v631 = vunpack.c.h.b16 %v394
      %v632 = vunpack.c.l.b16 %v395
      %v633 = vunpack.c.h.b16 %v395
      %v634 = vunpack.c.l.b16 %v396
      %v635 = vunpack.c.h.b16 %v396
      %v636 = vunpack.c.l.b16 %v397
      %v637 = vunpack.c.h.b16 %v397
      %v638 = vunpack.c.l.b16 %v398
      %v639 = vunpack.c.h.b16 %v398
      %v640 = vunpack.c.l.b16 %v399
      %v641 = vunpack.c.h.b16 %v399
      %v642 = vunpack.c.l.b16 %v400
      %v643 = vunpack.c.h.b16 %v400
      %v644 = vunpack.c.l.b16 %v401
      %v645 = vunpack.c.h.b16 %v401
      %v646 = vunpack.c.l.b16 %v402
      %v647 = vunpack.c.h.b16 %v402
      %v648 = vunpack.c.l.b16 %v403
      %v649 = vunpack.c.h.b16 %v403
      %v650 = vunpack.c.l.b16 %v404
      %v651 = vunpack.c.h.b16 %v404
      %v652 = vunpack.c.l.b16 %v405
      %v653 = vunpack.c.h.b16 %v405
      %v654 = vunpack.c.l.b16 %v406
      %v655 = vunpack.c.h.b16 %v406
      %v656 = vunpack.c.l.b16 %v407
      %v657 = vunpack.c.h.b16 %v407
      %v658 = vunpack.c.l.b16 %v408
      %v659 = vunpack.c.h.b16 %v408
      %v660 = vunpack.c.l.b16 %v409
      %v661 = vunpack.c.h.b16 %v409
      %v662 = vpack.c.b16 %v496, %v494
      %v663 = vpack.c.b16 %v497, %v495
      %v664 = vpack.c.b16 %v500, %v498
      %v665 = vpack.c.b16 %v501, %v499
      %v666 = vpack.c.b16 %v504, %v502
      %v667 = vpack.c.b16 %v505, %v503
      %v668 = vpack.c.b16 %v508, %v506
      %v669 = vpack.c.b16 %v509, %v507
      %v670 = vpack.c.b16 %v512, %v510
      %v671 = vpack.c.b16 %v513, %v511
      %v672 = vpack.c.b16 %v516, %v514
      %v673 = vpack.c.b16 %v517, %v515
      %v674 = vpack.c.b16 %v520, %v518
      %v675 = vpack.c.b16 %v521, %v519
      %v676 = vpack.c.b16 %v524, %v522
      %v677 = vpack.c.b16 %v525, %v523
      %v678 = vpack.c.b16 %v528, %v526
      %v679 = vpack.c.b16 %v529, %v527
      %v680 = vpack.c.b16 %v532, %v530
      %v681 = vpack.c.b16 %v533, %v531
      %v682 = vpack.c.b16 %v536, %v534
      %v683 = vpack.c.b16 %v537, %v535
      %v684 = vpack.c.b16 %v540, %v538
      %v685 = vpack.c.b16 %v541, %v539
      %v686 = vpack.c.b16 %v544, %v542
      %v687 = vpack.c.b16 %v545, %v543
      %v688 = vpack.c.b16 %v548, %v546
      %v689 = vpack.c.b16 %v549, %v547
      %v690 = vpack.c.b16 %v552, %v550
      %v691 = vpack.c.b16 %v553, %v551
      %v692 = vpack.c.b16 %v556, %v554
      %v693 = vpack.c.b16 %v557, %v555
      %v694 = vpack.c.b16 %v560, %v558
      %v695 = vpack.c.b16 %v561, %v559
      %v696 = vpack.c.b16 %v564, %v562
      %v697 = vpack.c.b16 %v565, %v563
      %v698 = vpack.c.b16 %v568, %v566
      %v699 = vpack.c.b16 %v569, %v567
      %v700 = vpack.c.b16 %v572, %v570
      %v701 = vpack.c.b16 %v573, %v571
      %v702 = vpack.c.b16 %v576, %v574
      %v703 = vpack.c.b16 %v577, %v575
      %v704 = vpack.c.b16 %v580, %v578
      %v705 = vpack.c.b16 %v581, %v579
      %v706 = vpack.c.b16 %v584, %v582
      %v707 = vpack.c.b16 %v585, %v583
      %v708 = vpack.c.b16 %v588, %v586
      %v709 = vpack.c.b16 %v589, %v587
      %v710 = vpack.c.b16 %v592, %v590
      %v711 = vpack.c.b16 %v593, %v591
      %v712 = vpack.c.b16 %v596, %v594
      %v713 = vpack.c.b16 %v597, %v595
      %v714 = vpack.c.b16 %v600, %v598
      %v715 = vpack.c.b16 %v601, %v599
      %v716 = vpack.c.b16 %v604, %v602
      %v717 = vpack.c.b16 %v605, %v603
      %v718 = vpack.c.b16 %v608, %v606
      %v719 = vpack.c.b16 %v609, %v607
      %v720 = vpack.c.b16 %v612, %v610
      %v721 = vpack.c.b16 %v613, %v611
      %v722 = vpack.c.b16 %v616, %v614
      %v723 = vpack.c.b16 %v617, %v615
      %v724 = vpack.c.b16 %v620, %v618
      %v725 = vpack.c.b16 %v621, %v619
      %v726 = vpack.c.b16 %v624, %v622
      %v727 = vpack.c.b16 %v625, %v623
      %v728 = vpack.c.b16 %v628, %v626
      %v729 = vpack.c.b16 %v629, %v627
      %v730 = vpack.c.b16 %v632, %v630
      %v731 = vpack.c.b16 %v633, %v631
      %v732 = vpack.c.b16 %v636, %v634
      %v733 = vpack.c.b16 %v637, %v635
      %v734 = vpack.c.b16 %v640, %v638
      %v735 = vpack.c.b16 %v641, %v639
      %v736 = vpack.c.b16 %v644, %v642
      %v737 = vpack.c.b16 %v645, %v643
      %v738 = vpack.c.b16 %v648, %v646
      %v739 = vpack.c.b16 %v649, %v647
      %v740 = vpack.c.b16 %v652, %v650
      %v741 = vpack.c.b16 %v653, %v651
      %v742 = vpack.c.b16 %v656, %v654
      %v743 = vpack.c.b16 %v657, %v655
      %v744 = vpack.c.b16 %v660, %v658
      %v745 = vpack.c.b16 %v661, %v659
      %v816 = vunpack.c.l.b16 %v298
      %v817 = vunpack.c.h.b16 %v298
      %v818 = vunpack.c.l.b16 %v299
      %v819 = vunpack.c.h.b16 %v299
      %v820 = vunpack.c.l.b16 %v300
      %v821 = vunpack.c.h.b16 %v300
      %v822 = vunpack.c.l.b16 %v301
      %v823 = vunpack.c.h.b16 %v301
      %v824 = vunpack.c.l.b16 %v302
      %v825 = vunpack.c.h.b16 %v302
      %v826 = vunpack.c.l.b16 %v303
      %v827 = vunpack.c.h.b16 %v303
      %v828 = vunpack.c.l.b16 %v304
      %v829 = vunpack.c.h.b16 %v304
      %v830 = vunpack.c.l.b16 %v305
      %v831 = vunpack.c.h.b16 %v305
      %v832 = vunpack.c.l.b16 %v306
      %v833 = vunpack.c.h.b16 %v306
      %v834 = vunpack.c.l.b16 %v307
      %v835 = vunpack.c.h.b16 %v307
      %v836 = vunpack.c.l.b16 %v308
      %v837 = vunpack.c.h.b16 %v308
      %v838 = vunpack.c.l.b16 %v309
      %v839 = vunpack.c.h.b16 %v309
      %v840 = vunpack.c.l.b16 %v310
      %v841 = vunpack.c.h.b16 %v310
      %v842 = vunpack.c.l.b16 %v311
      %v843 = vunpack.c.h.b16 %v311
      %v844 = vunpack.c.l.b16 %v312
      %v845 = vunpack.c.h.b16 %v312
      %v846 = vunpack.c.l.b16 %v313
      %v847 = vunpack.c.h.b16 %v313
      %v848 = vunpack.c.l.b16 %v314
      %v849 = vunpack.c.h.b16 %v314
      %v850 = vunpack.c.l.b16 %v315
      %v851 = vunpack.c.h.b16 %v315
      %v852 = vunpack.c.l.b16 %v316
      %v853 = vunpack.c.h.b16 %v316
      %v854 = vunpack.c.l.b16 %v317
      %v855 = vunpack.c.h.b16 %v317
      %v856 = vunpack.c.l.b16 %v318
      %v857 = vunpack.c.h.b16 %v318
      %v858 = vunpack.c.l.b16 %v319
      %v859 = vunpack.c.h.b16 %v319
      %v860 = vunpack.c.l.b16 %v320
      %v861 = vunpack.c.h.b16 %v320
      %v862 = vunpack.c.l.b16 %v321
      %v863 = vunpack.c.h.b16 %v321
      %v864 = vunpack.c.l.b16 %v322
      %v865 = vunpack.c.h.b16 %v322
      %v866 = vunpack.c.l.b16 %v323
      %v867 = vunpack.c.h.b16 %v323
      %v868 = vunpack.c.l.b16 %v324
      %v869 = vunpack.c.h.b16 %v324
      %v870 = vunpack.c.l.b16 %v325
      %v871 = vunpack.c.h.b16 %v325
      %v872 = vpack.c.b16 %v818, %v816
      %v873 = vpack.c.b16 %v819, %v817
      %v874 = vpack.c.b16 %v822, %v820
      %v875 = vpack.c.b16 %v823, %v821
      %v876 = vpack.c.b16 %v826, %v824
      %v877 = vpack.c.b16 %v827, %v825
      %v878 = vpack.c.b16 %v830, %v828
      %v879 = vpack.c.b16 %v831, %v829
      %v880 = vpack.c.b16 %v834, %v832
      %v881 = vpack.c.b16 %v835, %v833
      %v882 = vpack.c.b16 %v838, %v836
      %v883 = vpack.c.b16 %v839, %v837
      %v884 = vpack.c.b16 %v842, %v840
      %v885 = vpack.c.b16 %v843, %v841
      %v886 = vpack.c.b16 %v846, %v844
      %v887 = vpack.c.b16 %v847, %v845
      %v888 = vpack.c.b16 %v850, %v848
      %v889 = vpack.c.b16 %v851, %v849
      %v890 = vpack.c.b16 %v854, %v852
      %v891 = vpack.c.b16 %v855, %v853
      %v892 = vpack.c.b16 %v858, %v856
      %v893 = vpack.c.b16 %v859, %v857
      %v894 = vpack.c.b16 %v862, %v860
      %v895 = vpack.c.b16 %v863, %v861
      %v896 = vpack.c.b16 %v866, %v864
      %v897 = vpack.c.b16 %v867, %v865
      %v898 = vpack.c.b16 %v870, %v868
      %v899 = vpack.c.b16 %v871, %v869
      %vm928 = vcmask 785408
      %v930 = vsel %vm928, %v663, 0
      %v933 = vsel %vm928, %v665, 0
      %v936 = vsel %vm928, %v667, 0
      %v939 = vsel %vm928, %v669, 0
      %v942 = vsel %vm928, %v671, 0
      %v945 = vsel %vm928, %v673, 0
      %v948 = vsel %vm928, %v675, 0
      %v951 = vsel %vm928, %v677, 0
      %v954 = vsel %vm928, %v679, 0
      %v957 = vsel %vm928, %v681, 0
      %v960 = vsel %vm928, %v683, 0
      %v963 = vsel %vm928, %v685, 0
      %v966 = vsel %vm928, %v687, 0
      %v969 = vsel %vm928, %v689, 0
      %v972 = vsel %vm928, %v691, 0
      %v975 = vsel %vm928, %v693, 0
      %v978 = vsel %vm928, %v695, 0
      %v981 = vsel %vm928, %v697, 0
      %v984 = vsel %vm928, %v699, 0
      %v987 = vsel %vm928, %v701, 0
      %v990 = vsel %vm928, %v703, 0
      %v993 = vsel %vm928, %v705, 0
      %v996 = vsel %vm928, %v707, 0
      %v999 = vsel %vm928, %v709, 0
      %v1002 = vsel %vm928, %v711, 0
      %v1005 = vsel %vm928, %v713, 0
      %v1008 = vsel %vm928, %v715, 0
      %v1011 = vsel %vm928, %v717, 0
      %v1014 = vsel %vm928, %v719, 0
      %v1017 = vsel %vm928, %v721, 0
      %v1020 = vsel %vm928, %v723, 0
      %v1023 = vsel %vm928, %v725, 0
      %v1026 = vsel %vm928, %v727, 0
      %v1029 = vsel %vm928, %v729, 0
      %v1032 = vsel %vm928, %v731, 0
      %v1035 = vsel %vm928, %v733, 0
      %v1038 = vsel %vm928, %v735, 0
      %v1041 = vsel %vm928, %v737, 0
      %v1044 = vsel %vm928, %v739, 0
      %v1047 = vsel %vm928, %v741, 0
      %v1050 = vsel %vm928, %v743, 0
      %v1053 = vsel %vm928, %v745, 0
      %1055 = vmatprep.subr.bf16.mxu0 %v873
      %1056 = vmatpush1.bf16.msra.mxu0 %v872
      %1057 = vmatprep.subr.bf16.mxu0 %v875
      %1058 = vmatpush1.bf16.msra.mxu0 %v874
      %1059 = vmatprep.subr.bf16.mxu0 %v877
      %1060 = vmatpush1.bf16.msra.mxu0 %v876
      %1061 = vmatprep.subr.bf16.mxu0 %v879
      %1062 = vmatpush1.bf16.msra.mxu0 %v878
      %1063 = vmatprep.subr.bf16.mxu0 %v881
      %1064 = vmatpush1.bf16.msra.mxu0 %v880
      %1065 = vmatprep.subr.bf16.mxu0 %v883
      %1066 = vmatpush1.bf16.msra.mxu0 %v882
      %1067 = vmatprep.subr.bf16.mxu0 %v885
      %1068 = vmatpush1.bf16.msra.mxu0 %v884
      %1069 = vmatprep.subr.bf16.mxu0 %v887
      %1070 = vmatpush1.bf16.msra.mxu0 %v886
      %1071 = vmatprep.subr.bf16.mxu0 %v889
      %1072 = vmatpush1.bf16.msra.mxu0 %v888
      %1073 = vmatprep.subr.bf16.mxu0 %v891
      %1074 = vmatpush1.bf16.msra.mxu0 %v890
      %1075 = vmatprep.subr.bf16.mxu0 %v893
      %1076 = vmatpush1.bf16.msra.mxu0 %v892
      %1077 = vmatprep.subr.bf16.mxu0 %v895
      %1078 = vmatpush1.bf16.msra.mxu0 %v894
      %1079 = vmatprep.subr.bf16.mxu0 %v897
      %1080 = vmatpush1.bf16.msra.mxu0 %v896
      %1081 = vmatprep.subr.bf16.mxu0 %v899
      %1082 = vmatpush1.bf16.msra.mxu0 %v898
      %1083 = vmatprep.subr.bf16.mxu0 0
      %1084 = vmatpush1.bf16.msra.mxu0 0
      %1085 = vmatprep.subr.bf16.mxu0 0
      %1086 = vmatpush1.bf16.msra.mxu0 0
      %1087 = vmatprep.mubr.bf16.mxu0 %v930
      %1088 = vmatmul.mubr.bf16.gmra.mrb[0].mxu0 %v662
      %v1089 = vpop.f32.mrb[0].mxu0
      %v1090 = vadd.f32 0.0, %v1089
      %v1091 = vpop.f32.mrb[0].mxu0
      %v1092 = vadd.f32 0.0, %v1091
      %v1093 = vpop.f32.mrb[0].mxu0
      %v1094 = vadd.f32 0.0, %v1093
      %v1095 = vpop.f32.mrb[0].mxu0
      %v1096 = vadd.f32 0.0, %v1095
      %1097 = vmatprep.mubr.bf16.mxu0 %v933
      %1098 = vmatmul.mubr.bf16.gmra.mrb[0].mxu0 %v664
      %v1099 = vpop.f32.mrb[0].mxu0
      %v1100 = vadd.f32 0.0, %v1099
      %v1101 = vpop.f32.mrb[0].mxu0
      %v1102 = vadd.f32 0.0, %v1101
      %v1103 = vpop.f32.mrb[0].mxu0
      %v1104 = vadd.f32 0.0, %v1103
      %v1105 = vpop.f32.mrb[0].mxu0
      %v1106 = vadd.f32 0.0, %v1105
      %1107 = vmatprep.mubr.bf16.mxu0 %v936
      %1108 = vmatmul.mubr.bf16.gmra.mrb[0].mxu0 %v666
      %v1109 = vpop.f32.mrb[0].mxu0
      %v1110 = vadd.f32 0.0, %v1109
      %v1111 = vpop.f32.mrb[0].mxu0
      %v1112 = vadd.f32 0.0, %v1111
      %v1113 = vpop.f32.mrb[0].mxu0
      %v1114 = vadd.f32 0.0, %v1113
      %v1115 = vpop.f32.mrb[0].mxu0
      %v1116 = vadd.f32 0.0, %v1115
      %1117 = vmatprep.mubr.bf16.mxu0 %v939
      %1118 = vmatmul.mubr.bf16.gmra.mrb[0].mxu0 %v668
      %v1119 = vpop.f32.mrb[0].mxu0
      %v1120 = vadd.f32 0.0, %v1119
      %v1121 = vpop.f32.mrb[0].mxu0
      %v1122 = vadd.f32 0.0, %v1121
      %v1123 = vpop.f32.mrb[0].mxu0
      %v1124 = vadd.f32 0.0, %v1123
      %v1125 = vpop.f32.mrb[0].mxu0
      %v1126 = vadd.f32 0.0, %v1125
      %1127 = vmatprep.mubr.bf16.mxu0 %v942
      %1128 = vmatmul.mubr.bf16.gmra.mrb[0].mxu0 %v670
      %v1129 = vpop.f32.mrb[0].mxu0
      %v1130 = vadd.f32 0.0, %v1129
      %v1131 = vpop.f32.mrb[0].mxu0
      %v1132 = vadd.f32 0.0, %v1131
      %v1133 = vpop.f32.mrb[0].mxu0
      %v1134 = vadd.f32 0.0, %v1133
      %v1135 = vpop.f32.mrb[0].mxu0
      %v1136 = vadd.f32 0.0, %v1135
      %1137 = vmatprep.mubr.bf16.mxu0 %v945
      %1138 = vmatmul.mubr.bf16.gmra.mrb[0].mxu0 %v672
      %v1139 = vpop.f32.mrb[0].mxu0
      %v1140 = vadd.f32 0.0, %v1139
      %v1141 = vpop.f32.mrb[0].mxu0
      %v1142 = vadd.f32 0.0, %v1141
      %v1143 = vpop.f32.mrb[0].mxu0
      %v1144 = vadd.f32 0.0, %v1143
      %v1145 = vpop.f32.mrb[0].mxu0
      %v1146 = vadd.f32 0.0, %v1145
      %1147 = vmatprep.mubr.bf16.mxu0 %v948
      %1148 = vmatmul.mubr.bf16.gmra.mrb[0].mxu0 %v674
      %v1149 = vpop.f32.mrb[0].mxu0
      %v1150 = vadd.f32 0.0, %v1149
      %v1151 = vpop.f32.mrb[0].mxu0
      %v1152 = vadd.f32 0.0, %v1151
      %v1153 = vpop.f32.mrb[0].mxu0
      %v1154 = vadd.f32 0.0, %v1153
      %v1155 = vpop.f32.mrb[0].mxu0
      %v1156 = vadd.f32 0.0, %v1155
      %1157 = vmatprep.mubr.bf16.mxu0 %v951
      %1158 = vmatmul.mubr.bf16.gmra.mrb[0].mxu0 %v676
      %v1159 = vpop.f32.mrb[0].mxu0
      %v1160 = vadd.f32 0.0, %v1159
      %v1161 = vpop.f32.mrb[0].mxu0
      %v1162 = vadd.f32 0.0, %v1161
      %v1163 = vpop.f32.mrb[0].mxu0
      %v1164 = vadd.f32 0.0, %v1163
      %v1165 = vpop.f32.mrb[0].mxu0
      %v1166 = vadd.f32 0.0, %v1165
      %1167 = vmatprep.mubr.bf16.mxu0 %v954
      %1168 = vmatmul.mubr.bf16.gmra.mrb[0].mxu0 %v678
      %v1169 = vpop.f32.mrb[0].mxu0
      %v1170 = vadd.f32 0.0, %v1169
      %v1171 = vpop.f32.mrb[0].mxu0
      %v1172 = vadd.f32 0.0, %v1171
      %v1173 = vpop.f32.mrb[0].mxu0
      %v1174 = vadd.f32 0.0, %v1173
      %v1175 = vpop.f32.mrb[0].mxu0
      %v1176 = vadd.f32 0.0, %v1175
      %1177 = vmatprep.mubr.bf16.mxu0 %v957
      %1178 = vmatmul.mubr.bf16.gmra.mrb[0].mxu0 %v680
      %v1179 = vpop.f32.mrb[0].mxu0
      %v1180 = vadd.f32 0.0, %v1179
      %v1181 = vpop.f32.mrb[0].mxu0
      %v1182 = vadd.f32 0.0, %v1181
      %v1183 = vpop.f32.mrb[0].mxu0
      %v1184 = vadd.f32 0.0, %v1183
      %v1185 = vpop.f32.mrb[0].mxu0
      %v1186 = vadd.f32 0.0, %v1185
      %1187 = vmatprep.mubr.bf16.mxu0 %v960
      %1188 = vmatmul.mubr.bf16.gmra.mrb[0].mxu0 %v682
      %v1189 = vpop.f32.mrb[0].mxu0
      %v1190 = vadd.f32 0.0, %v1189
      %v1191 = vpop.f32.mrb[0].mxu0
      %v1192 = vadd.f32 0.0, %v1191
      %v1193 = vpop.f32.mrb[0].mxu0
      %v1194 = vadd.f32 0.0, %v1193
      %v1195 = vpop.f32.mrb[0].mxu0
      %v1196 = vadd.f32 0.0, %v1195
      %1197 = vmatprep.mubr.bf16.mxu0 %v963
      %1198 = vmatmul.mubr.bf16.gmra.mrb[0].mxu0 %v684
      %v1199 = vpop.f32.mrb[0].mxu0
      %v1200 = vadd.f32 0.0, %v1199
      %v1201 = vpop.f32.mrb[0].mxu0
      %v1202 = vadd.f32 0.0, %v1201
      %v1203 = vpop.f32.mrb[0].mxu0
      %v1204 = vadd.f32 0.0, %v1203
      %v1205 = vpop.f32.mrb[0].mxu0
      %v1206 = vadd.f32 0.0, %v1205
      %1207 = vmatprep.mubr.bf16.mxu0 %v966
      %1208 = vmatmul.mubr.bf16.gmra.mrb[0].mxu0 %v686
      %v1209 = vpop.f32.mrb[0].mxu0
      %v1210 = vadd.f32 0.0, %v1209
      %v1211 = vpop.f32.mrb[0].mxu0
      %v1212 = vadd.f32 0.0, %v1211
      %v1213 = vpop.f32.mrb[0].mxu0
      %v1214 = vadd.f32 0.0, %v1213
      %v1215 = vpop.f32.mrb[0].mxu0
      %v1216 = vadd.f32 0.0, %v1215
      %1217 = vmatprep.mubr.bf16.mxu0 %v969
      %1218 = vmatmul.mubr.bf16.gmra.mrb[0].mxu0 %v688
      %v1219 = vpop.f32.mrb[0].mxu0
      %v1220 = vadd.f32 0.0, %v1219
      %v1221 = vpop.f32.mrb[0].mxu0
      %v1222 = vadd.f32 0.0, %v1221
      %v1223 = vpop.f32.mrb[0].mxu0
      %v1224 = vadd.f32 0.0, %v1223
      %v1225 = vpop.f32.mrb[0].mxu0
      %v1226 = vadd.f32 0.0, %v1225
      %1227 = vmatprep.mubr.bf16.mxu0 %v972
      %1228 = vmatmul.mubr.bf16.gmra.mrb[0].mxu0 %v690
      %v1229 = vpop.f32.mrb[0].mxu0
      %v1230 = vadd.f32 0.0, %v1229
      %v1231 = vpop.f32.mrb[0].mxu0
      %v1232 = vadd.f32 0.0, %v1231
      %v1233 = vpop.f32.mrb[0].mxu0
      %v1234 = vadd.f32 0.0, %v1233
      %v1235 = vpop.f32.mrb[0].mxu0
      %v1236 = vadd.f32 0.0, %v1235
      %1237 = vmatprep.mubr.bf16.mxu0 %v975
      %1238 = vmatmul.mubr.bf16.gmra.mrb[0].mxu0 %v692
      %v1239 = vpop.f32.mrb[0].mxu0
      %v1240 = vadd.f32 0.0, %v1239
      %v1241 = vpop.f32.mrb[0].mxu0
      %v1242 = vadd.f32 0.0, %v1241
      %v1243 = vpop.f32.mrb[0].mxu0
      %v1244 = vadd.f32 0.0, %v1243
      %v1245 = vpop.f32.mrb[0].mxu0
      %v1246 = vadd.f32 0.0, %v1245
      %1247 = vmatprep.mubr.bf16.mxu0 %v978
      %1248 = vmatmul.mubr.bf16.gmra.mrb[0].mxu0 %v694
      %v1249 = vpop.f32.mrb[0].mxu0
      %v1250 = vadd.f32 0.0, %v1249
      %v1251 = vpop.f32.mrb[0].mxu0
      %v1252 = vadd.f32 0.0, %v1251
      %v1253 = vpop.f32.mrb[0].mxu0
      %v1254 = vadd.f32 0.0, %v1253
      %v1255 = vpop.f32.mrb[0].mxu0
      %v1256 = vadd.f32 0.0, %v1255
      %1257 = vmatprep.mubr.bf16.mxu0 %v981
      %1258 = vmatmul.mubr.bf16.gmra.mrb[0].mxu0 %v696
      %v1259 = vpop.f32.mrb[0].mxu0
      %v1260 = vadd.f32 0.0, %v1259
      %v1261 = vpop.f32.mrb[0].mxu0
      %v1262 = vadd.f32 0.0, %v1261
      %v1263 = vpop.f32.mrb[0].mxu0
      %v1264 = vadd.f32 0.0, %v1263
      %v1265 = vpop.f32.mrb[0].mxu0
      %v1266 = vadd.f32 0.0, %v1265
      %1267 = vmatprep.mubr.bf16.mxu0 %v984
      %1268 = vmatmul.mubr.bf16.gmra.mrb[0].mxu0 %v698
      %v1269 = vpop.f32.mrb[0].mxu0
      %v1270 = vadd.f32 0.0, %v1269
      %v1271 = vpop.f32.mrb[0].mxu0
      %v1272 = vadd.f32 0.0, %v1271
      %v1273 = vpop.f32.mrb[0].mxu0
      %v1274 = vadd.f32 0.0, %v1273
      %v1275 = vpop.f32.mrb[0].mxu0
      %v1276 = vadd.f32 0.0, %v1275
      %1277 = vmatprep.mubr.bf16.mxu0 %v987
      %1278 = vmatmul.mubr.bf16.gmra.mrb[0].mxu0 %v700
      %v1279 = vpop.f32.mrb[0].mxu0
      %v1280 = vadd.f32 0.0, %v1279
      %v1281 = vpop.f32.mrb[0].mxu0
      %v1282 = vadd.f32 0.0, %v1281
      %v1283 = vpop.f32.mrb[0].mxu0
      %v1284 = vadd.f32 0.0, %v1283
      %v1285 = vpop.f32.mrb[0].mxu0
      %v1286 = vadd.f32 0.0, %v1285
      %1287 = vmatprep.mubr.bf16.mxu0 %v990
      %1288 = vmatmul.mubr.bf16.gmra.mrb[0].mxu0 %v702
      %v1289 = vpop.f32.mrb[0].mxu0
      %v1290 = vadd.f32 0.0, %v1289
      %v1291 = vpop.f32.mrb[0].mxu0
      %v1292 = vadd.f32 0.0, %v1291
      %v1293 = vpop.f32.mrb[0].mxu0
      %v1294 = vadd.f32 0.0, %v1293
      %v1295 = vpop.f32.mrb[0].mxu0
      %v1296 = vadd.f32 0.0, %v1295
      %1297 = vmatprep.mubr.bf16.mxu0 %v993
      %1298 = vmatmul.mubr.bf16.gmra.mrb[0].mxu0 %v704
      %v1299 = vpop.f32.mrb[0].mxu0
      %v1300 = vadd.f32 0.0, %v1299
      %v1301 = vpop.f32.mrb[0].mxu0
      %v1302 = vadd.f32 0.0, %v1301
      %v1303 = vpop.f32.mrb[0].mxu0
      %v1304 = vadd.f32 0.0, %v1303
      %v1305 = vpop.f32.mrb[0].mxu0
      %v1306 = vadd.f32 0.0, %v1305
      %1307 = vmatprep.mubr.bf16.mxu0 %v996
      %1308 = vmatmul.mubr.bf16.gmra.mrb[0].mxu0 %v706
      %v1309 = vpop.f32.mrb[0].mxu0
      %v1310 = vadd.f32 0.0, %v1309
      %v1311 = vpop.f32.mrb[0].mxu0
      %v1312 = vadd.f32 0.0, %v1311
      %v1313 = vpop.f32.mrb[0].mxu0
      %v1314 = vadd.f32 0.0, %v1313
      %v1315 = vpop.f32.mrb[0].mxu0
      %v1316 = vadd.f32 0.0, %v1315
      %1317 = vmatprep.mubr.bf16.mxu0 %v999
      %1318 = vmatmul.mubr.bf16.gmra.mrb[0].mxu0 %v708
      %v1319 = vpop.f32.mrb[0].mxu0
      %v1320 = vadd.f32 0.0, %v1319
      %v1321 = vpop.f32.mrb[0].mxu0
      %v1322 = vadd.f32 0.0, %v1321
      %v1323 = vpop.f32.mrb[0].mxu0
      %v1324 = vadd.f32 0.0, %v1323
      %v1325 = vpop.f32.mrb[0].mxu0
      %v1326 = vadd.f32 0.0, %v1325
      %1327 = vmatprep.mubr.bf16.mxu0 %v1002
      %1328 = vmatmul.mubr.bf16.gmra.mrb[0].mxu0 %v710
      %v1329 = vpop.f32.mrb[0].mxu0
      %v1330 = vadd.f32 0.0, %v1329
      %v1331 = vpop.f32.mrb[0].mxu0
      %v1332 = vadd.f32 0.0, %v1331
      %v1333 = vpop.f32.mrb[0].mxu0
      %v1334 = vadd.f32 0.0, %v1333
      %v1335 = vpop.f32.mrb[0].mxu0
      %v1336 = vadd.f32 0.0, %v1335
      %1337 = vmatprep.mubr.bf16.mxu0 %v1005
      %1338 = vmatmul.mubr.bf16.gmra.mrb[0].mxu0 %v712
      %v1339 = vpop.f32.mrb[0].mxu0
      %v1340 = vadd.f32 0.0, %v1339
      %v1341 = vpop.f32.mrb[0].mxu0
      %v1342 = vadd.f32 0.0, %v1341
      %v1343 = vpop.f32.mrb[0].mxu0
      %v1344 = vadd.f32 0.0, %v1343
      %v1345 = vpop.f32.mrb[0].mxu0
      %v1346 = vadd.f32 0.0, %v1345
      %1347 = vmatprep.mubr.bf16.mxu0 %v1008
      %1348 = vmatmul.mubr.bf16.gmra.mrb[0].mxu0 %v714
      %v1349 = vpop.f32.mrb[0].mxu0
      %v1350 = vadd.f32 0.0, %v1349
      %v1351 = vpop.f32.mrb[0].mxu0
      %v1352 = vadd.f32 0.0, %v1351
      %v1353 = vpop.f32.mrb[0].mxu0
      %v1354 = vadd.f32 0.0, %v1353
      %v1355 = vpop.f32.mrb[0].mxu0
      %v1356 = vadd.f32 0.0, %v1355
      %1357 = vmatprep.mubr.bf16.mxu0 %v1011
      %1358 = vmatmul.mubr.bf16.gmra.mrb[0].mxu0 %v716
      %v1359 = vpop.f32.mrb[0].mxu0
      %v1360 = vadd.f32 0.0, %v1359
      %v1361 = vpop.f32.mrb[0].mxu0
      %v1362 = vadd.f32 0.0, %v1361
      %v1363 = vpop.f32.mrb[0].mxu0
      %v1364 = vadd.f32 0.0, %v1363
      %v1365 = vpop.f32.mrb[0].mxu0
      %v1366 = vadd.f32 0.0, %v1365
      %1367 = vmatprep.mubr.bf16.mxu0 %v1014
      %1368 = vmatmul.mubr.bf16.gmra.mrb[0].mxu0 %v718
      %v1369 = vpop.f32.mrb[0].mxu0
      %v1370 = vadd.f32 0.0, %v1369
      %v1371 = vpop.f32.mrb[0].mxu0
      %v1372 = vadd.f32 0.0, %v1371
      %v1373 = vpop.f32.mrb[0].mxu0
      %v1374 = vadd.f32 0.0, %v1373
      %v1375 = vpop.f32.mrb[0].mxu0
      %v1376 = vadd.f32 0.0, %v1375
      %1377 = vmatprep.mubr.bf16.mxu0 %v1017
      %1378 = vmatmul.mubr.bf16.gmra.mrb[0].mxu0 %v720
      %v1379 = vpop.f32.mrb[0].mxu0
      %v1380 = vadd.f32 0.0, %v1379
      %v1381 = vpop.f32.mrb[0].mxu0
      %v1382 = vadd.f32 0.0, %v1381
      %v1383 = vpop.f32.mrb[0].mxu0
      %v1384 = vadd.f32 0.0, %v1383
      %v1385 = vpop.f32.mrb[0].mxu0
      %v1386 = vadd.f32 0.0, %v1385
      %1387 = vmatprep.mubr.bf16.mxu0 %v1020
      %1388 = vmatmul.mubr.bf16.gmra.mrb[0].mxu0 %v722
      %v1389 = vpop.f32.mrb[0].mxu0
      %v1390 = vadd.f32 0.0, %v1389
      %v1391 = vpop.f32.mrb[0].mxu0
      %v1392 = vadd.f32 0.0, %v1391
      %v1393 = vpop.f32.mrb[0].mxu0
      %v1394 = vadd.f32 0.0, %v1393
      %v1395 = vpop.f32.mrb[0].mxu0
      %v1396 = vadd.f32 0.0, %v1395
      %1397 = vmatprep.mubr.bf16.mxu0 %v1023
      %1398 = vmatmul.mubr.bf16.gmra.mrb[0].mxu0 %v724
      %v1399 = vpop.f32.mrb[0].mxu0
      %v1400 = vadd.f32 0.0, %v1399
      %v1401 = vpop.f32.mrb[0].mxu0
      %v1402 = vadd.f32 0.0, %v1401
      %v1403 = vpop.f32.mrb[0].mxu0
      %v1404 = vadd.f32 0.0, %v1403
      %v1405 = vpop.f32.mrb[0].mxu0
      %v1406 = vadd.f32 0.0, %v1405
      %1407 = vmatprep.mubr.bf16.mxu0 %v1026
      %1408 = vmatmul.mubr.bf16.gmra.mrb[0].mxu0 %v726
      %v1409 = vpop.f32.mrb[0].mxu0
      %v1410 = vadd.f32 0.0, %v1409
      %v1411 = vpop.f32.mrb[0].mxu0
      %v1412 = vadd.f32 0.0, %v1411
      %v1413 = vpop.f32.mrb[0].mxu0
      %v1414 = vadd.f32 0.0, %v1413
      %v1415 = vpop.f32.mrb[0].mxu0
      %v1416 = vadd.f32 0.0, %v1415
      %1417 = vmatprep.mubr.bf16.mxu0 %v1029
      %1418 = vmatmul.mubr.bf16.gmra.mrb[0].mxu0 %v728
      %v1419 = vpop.f32.mrb[0].mxu0
      %v1420 = vadd.f32 0.0, %v1419
      %v1421 = vpop.f32.mrb[0].mxu0
      %v1422 = vadd.f32 0.0, %v1421
      %v1423 = vpop.f32.mrb[0].mxu0
      %v1424 = vadd.f32 0.0, %v1423
      %v1425 = vpop.f32.mrb[0].mxu0
      %v1426 = vadd.f32 0.0, %v1425
      %1427 = vmatprep.mubr.bf16.mxu0 %v1032
      %1428 = vmatmul.mubr.bf16.gmra.mrb[0].mxu0 %v730
      %v1429 = vpop.f32.mrb[0].mxu0
      %v1430 = vadd.f32 0.0, %v1429
      %v1431 = vpop.f32.mrb[0].mxu0
      %v1432 = vadd.f32 0.0, %v1431
      %v1433 = vpop.f32.mrb[0].mxu0
      %v1434 = vadd.f32 0.0, %v1433
      %v1435 = vpop.f32.mrb[0].mxu0
      %v1436 = vadd.f32 0.0, %v1435
      %1437 = vmatprep.mubr.bf16.mxu0 %v1035
      %1438 = vmatmul.mubr.bf16.gmra.mrb[0].mxu0 %v732
      %v1439 = vpop.f32.mrb[0].mxu0
      %v1440 = vadd.f32 0.0, %v1439
      %v1441 = vpop.f32.mrb[0].mxu0
      %v1442 = vadd.f32 0.0, %v1441
      %v1443 = vpop.f32.mrb[0].mxu0
      %v1444 = vadd.f32 0.0, %v1443
      %v1445 = vpop.f32.mrb[0].mxu0
      %v1446 = vadd.f32 0.0, %v1445
      %1447 = vmatprep.mubr.bf16.mxu0 %v1038
      %1448 = vmatmul.mubr.bf16.gmra.mrb[0].mxu0 %v734
      %v1449 = vpop.f32.mrb[0].mxu0
      %v1450 = vadd.f32 0.0, %v1449
      %v1451 = vpop.f32.mrb[0].mxu0
      %v1452 = vadd.f32 0.0, %v1451
      %v1453 = vpop.f32.mrb[0].mxu0
      %v1454 = vadd.f32 0.0, %v1453
      %v1455 = vpop.f32.mrb[0].mxu0
      %v1456 = vadd.f32 0.0, %v1455
      %1457 = vmatprep.mubr.bf16.mxu0 %v1041
      %1458 = vmatmul.mubr.bf16.gmra.mrb[0].mxu0 %v736
      %v1459 = vpop.f32.mrb[0].mxu0
      %v1460 = vadd.f32 0.0, %v1459
      %v1461 = vpop.f32.mrb[0].mxu0
      %v1462 = vadd.f32 0.0, %v1461
      %v1463 = vpop.f32.mrb[0].mxu0
      %v1464 = vadd.f32 0.0, %v1463
      %v1465 = vpop.f32.mrb[0].mxu0
      %v1466 = vadd.f32 0.0, %v1465
      %1467 = vmatprep.mubr.bf16.mxu0 %v1044
      %1468 = vmatmul.mubr.bf16.gmra.mrb[0].mxu0 %v738
      %v1469 = vpop.f32.mrb[0].mxu0
      %v1470 = vadd.f32 0.0, %v1469
      %v1471 = vpop.f32.mrb[0].mxu0
      %v1472 = vadd.f32 0.0, %v1471
      %v1473 = vpop.f32.mrb[0].mxu0
      %v1474 = vadd.f32 0.0, %v1473
      %v1475 = vpop.f32.mrb[0].mxu0
      %v1476 = vadd.f32 0.0, %v1475
      %1477 = vmatprep.mubr.bf16.mxu0 %v1047
      %1478 = vmatmul.mubr.bf16.gmra.mrb[0].mxu0 %v740
      %v1479 = vpop.f32.mrb[0].mxu0
      %v1480 = vadd.f32 0.0, %v1479
      %v1481 = vpop.f32.mrb[0].mxu0
      %v1482 = vadd.f32 0.0, %v1481
      %v1483 = vpop.f32.mrb[0].mxu0
      %v1484 = vadd.f32 0.0, %v1483
      %v1485 = vpop.f32.mrb[0].mxu0
      %v1486 = vadd.f32 0.0, %v1485
      %1487 = vmatprep.mubr.bf16.mxu0 %v1050
      %1488 = vmatmul.mubr.bf16.gmra.mrb[0].mxu0 %v742
      %v1489 = vpop.f32.mrb[0].mxu0
      %v1490 = vadd.f32 0.0, %v1489
      %v1491 = vpop.f32.mrb[0].mxu0
      %v1492 = vadd.f32 0.0, %v1491
      %v1493 = vpop.f32.mrb[0].mxu0
      %v1494 = vadd.f32 0.0, %v1493
      %v1495 = vpop.f32.mrb[0].mxu0
      %v1496 = vadd.f32 0.0, %v1495
      %1497 = vmatprep.mubr.bf16.mxu0 %v1053
      %1498 = vmatmul.mubr.bf16.gmra.mrb[0].mxu0 %v744
      %v1499 = vpop.f32.mrb[0].mxu0
      %v1500 = vadd.f32 0.0, %v1499
      %v1501 = vpop.f32.mrb[0].mxu0
      %v1502 = vadd.f32 0.0, %v1501
      %v1503 = vpop.f32.mrb[0].mxu0
      %v1504 = vadd.f32 0.0, %v1503
      %v1505 = vpop.f32.mrb[0].mxu0
      %v1506 = vadd.f32 0.0, %v1505
      %1507 = vdwg.mxu0
      %1508 = vst [vmem:[%s239] sm:$0xff] %v1090
      %vm1509 = vcmask 556032
      %1510 = vst.msk [vmem:[%s239 + $0x8] sm:$0xff] %vm1509, %v1092
      %1511 = vst [vmem:[%s239 + $0x10] sm:$0xff] %v1094
      %1512 = vst.msk [vmem:[%s239 + $0x18] sm:$0xff] %vm1509, %v1096
      %1513 = vst [vmem:[%s239 + $0x20] sm:$0xff] %v1100
      %1514 = vst.msk [vmem:[%s239 + $0x28] sm:$0xff] %vm1509, %v1102
      %1515 = vst [vmem:[%s239 + $0x30] sm:$0xff] %v1104
      %1516 = vst.msk [vmem:[%s239 + $0x38] sm:$0xff] %vm1509, %v1106
      %1517 = vst [vmem:[%s239 + $0x40] sm:$0xff] %v1110
      %1518 = vst.msk [vmem:[%s239 + $0x48] sm:$0xff] %vm1509, %v1112
      %1519 = vst [vmem:[%s239 + $0x50] sm:$0xff] %v1114
      %1520 = vst.msk [vmem:[%s239 + $0x58] sm:$0xff] %vm1509, %v1116
      %1521 = vst [vmem:[%s239 + $0x60] sm:$0xff] %v1120
      %1522 = vst.msk [vmem:[%s239 + $0x68] sm:$0xff] %vm1509, %v1122
      %1523 = vst [vmem:[%s239 + $0x70] sm:$0xff] %v1124
      %1524 = vst.msk [vmem:[%s239 + $0x78] sm:$0xff] %vm1509, %v1126
      %1525 = vst [vmem:[%s239 + $0x80] sm:$0xff] %v1130
      %1526 = vst.msk [vmem:[%s239 + $0x88] sm:$0xff] %vm1509, %v1132
      %1527 = vst [vmem:[%s239 + $0x90] sm:$0xff] %v1134
      %1528 = vst.msk [vmem:[%s239 + $0x98] sm:$0xff] %vm1509, %v1136
      %1529 = vst [vmem:[%s239 + $0xa0] sm:$0xff] %v1140
      %1530 = vst.msk [vmem:[%s239 + $0xa8] sm:$0xff] %vm1509, %v1142
      %1531 = vst [vmem:[%s239 + $0xb0] sm:$0xff] %v1144
      %1532 = vst.msk [vmem:[%s239 + $0xb8] sm:$0xff] %vm1509, %v1146
      %1533 = vst [vmem:[%s239 + $0xc0] sm:$0xff] %v1150
      %1534 = vst.msk [vmem:[%s239 + $0xc8] sm:$0xff] %vm1509, %v1152
      %1535 = vst [vmem:[%s239 + $0xd0] sm:$0xff] %v1154
      %1536 = vst.msk [vmem:[%s239 + $0xd8] sm:$0xff] %vm1509, %v1156
      %1537 = vst [vmem:[%s239 + $0xe0] sm:$0xff] %v1160
      %1538 = vst.msk [vmem:[%s239 + $0xe8] sm:$0xff] %vm1509, %v1162
      %1539 = vst [vmem:[%s239 + $0xf0] sm:$0xff] %v1164
      %1540 = vst.msk [vmem:[%s239 + $0xf8] sm:$0xff] %vm1509, %v1166
      %1541 = vst [vmem:[%s239 + $0x100] sm:$0xff] %v1170
      %1542 = vst.msk [vmem:[%s239 + $0x108] sm:$0xff] %vm1509, %v1172
      %1543 = vst [vmem:[%s239 + $0x110] sm:$0xff] %v1174
      %1544 = vst.msk [vmem:[%s239 + $0x118] sm:$0xff] %vm1509, %v1176
      %1545 = vst [vmem:[%s239 + $0x120] sm:$0xff] %v1180
      %1546 = vst.msk [vmem:[%s239 + $0x128] sm:$0xff] %vm1509, %v1182
      %1547 = vst [vmem:[%s239 + $0x130] sm:$0xff] %v1184
      %1548 = vst.msk [vmem:[%s239 + $0x138] sm:$0xff] %vm1509, %v1186
      %1549 = vst [vmem:[%s239 + $0x140] sm:$0xff] %v1190
      %1550 = vst.msk [vmem:[%s239 + $0x148] sm:$0xff] %vm1509, %v1192
      %1551 = vst [vmem:[%s239 + $0x150] sm:$0xff] %v1194
      %1552 = vst.msk [vmem:[%s239 + $0x158] sm:$0xff] %vm1509, %v1196
      %1553 = vst [vmem:[%s239 + $0x160] sm:$0xff] %v1200
      %1554 = vst.msk [vmem:[%s239 + $0x168] sm:$0xff] %vm1509, %v1202
      %1555 = vst [vmem:[%s239 + $0x170] sm:$0xff] %v1204
      %1556 = vst.msk [vmem:[%s239 + $0x178] sm:$0xff] %vm1509, %v1206
      %1557 = vst [vmem:[%s239 + $0x180] sm:$0xff] %v1210
      %1558 = vst.msk [vmem:[%s239 + $0x188] sm:$0xff] %vm1509, %v1212
      %1559 = vst [vmem:[%s239 + $0x190] sm:$0xff] %v1214
      %1560 = vst.msk [vmem:[%s239 + $0x198] sm:$0xff] %vm1509, %v1216
      %1561 = vst [vmem:[%s239 + $0x1a0] sm:$0xff] %v1220
      %1562 = vst.msk [vmem:[%s239 + $0x1a8] sm:$0xff] %vm1509, %v1222
      %1563 = vst [vmem:[%s239 + $0x1b0] sm:$0xff] %v1224
      %1564 = vst.msk [vmem:[%s239 + $0x1b8] sm:$0xff] %vm1509, %v1226
      %1565 = vst [vmem:[%s239 + $0x1c0] sm:$0xff] %v1230
      %1566 = vst.msk [vmem:[%s239 + $0x1c8] sm:$0xff] %vm1509, %v1232
      %1567 = vst [vmem:[%s239 + $0x1d0] sm:$0xff] %v1234
      %1568 = vst.msk [vmem:[%s239 + $0x1d8] sm:$0xff] %vm1509, %v1236
      %1569 = vst [vmem:[%s239 + $0x1e0] sm:$0xff] %v1240
      %1570 = vst.msk [vmem:[%s239 + $0x1e8] sm:$0xff] %vm1509, %v1242
      %1571 = vst [vmem:[%s239 + $0x1f0] sm:$0xff] %v1244
      %1572 = vst.msk [vmem:[%s239 + $0x1f8] sm:$0xff] %vm1509, %v1246
      %1573 = vst [vmem:[%s239 + $0x200] sm:$0xff] %v1250
      %1574 = vst.msk [vmem:[%s239 + $0x208] sm:$0xff] %vm1509, %v1252
      %1575 = vst [vmem:[%s239 + $0x210] sm:$0xff] %v1254
      %1576 = vst.msk [vmem:[%s239 + $0x218] sm:$0xff] %vm1509, %v1256
      %1577 = vst [vmem:[%s239 + $0x220] sm:$0xff] %v1260
      %1578 = vst.msk [vmem:[%s239 + $0x228] sm:$0xff] %vm1509, %v1262
      %1579 = vst [vmem:[%s239 + $0x230] sm:$0xff] %v1264
      %1580 = vst.msk [vmem:[%s239 + $0x238] sm:$0xff] %vm1509, %v1266
      %1581 = vst [vmem:[%s239 + $0x240] sm:$0xff] %v1270
      %1582 = vst.msk [vmem:[%s239 + $0x248] sm:$0xff] %vm1509, %v1272
      %1583 = vst [vmem:[%s239 + $0x250] sm:$0xff] %v1274
      %1584 = vst.msk [vmem:[%s239 + $0x258] sm:$0xff] %vm1509, %v1276
      %1585 = vst [vmem:[%s239 + $0x260] sm:$0xff] %v1280
      %1586 = vst.msk [vmem:[%s239 + $0x268] sm:$0xff] %vm1509, %v1282
      %1587 = vst [vmem:[%s239 + $0x270] sm:$0xff] %v1284
      %1588 = vst.msk [vmem:[%s239 + $0x278] sm:$0xff] %vm1509, %v1286
      %1589 = vst [vmem:[%s239 + $0x280] sm:$0xff] %v1290
      %1590 = vst.msk [vmem:[%s239 + $0x288] sm:$0xff] %vm1509, %v1292
      %1591 = vst [vmem:[%s239 + $0x290] sm:$0xff] %v1294
      %1592 = vst.msk [vmem:[%s239 + $0x298] sm:$0xff] %vm1509, %v1296
      %1593 = vst [vmem:[%s239 + $0x2a0] sm:$0xff] %v1300
      %1594 = vst.msk [vmem:[%s239 + $0x2a8] sm:$0xff] %vm1509, %v1302
      %1595 = vst [vmem:[%s239 + $0x2b0] sm:$0xff] %v1304
      %1596 = vst.msk [vmem:[%s239 + $0x2b8] sm:$0xff] %vm1509, %v1306
      %1597 = vst [vmem:[%s239 + $0x2c0] sm:$0xff] %v1310
      %1598 = vst.msk [vmem:[%s239 + $0x2c8] sm:$0xff] %vm1509, %v1312
      %1599 = vst [vmem:[%s239 + $0x2d0] sm:$0xff] %v1314
      %1600 = vst.msk [vmem:[%s239 + $0x2d8] sm:$0xff] %vm1509, %v1316
      %1601 = vst [vmem:[%s239 + $0x2e0] sm:$0xff] %v1320
      %1602 = vst.msk [vmem:[%s239 + $0x2e8] sm:$0xff] %vm1509, %v1322
      %1603 = vst [vmem:[%s239 + $0x2f0] sm:$0xff] %v1324
      %1604 = vst.msk [vmem:[%s239 + $0x2f8] sm:$0xff] %vm1509, %v1326
      %1605 = vst [vmem:[%s239 + $0x300] sm:$0xff] %v1330
      %1606 = vst.msk [vmem:[%s239 + $0x308] sm:$0xff] %vm1509, %v1332
      %1607 = vst [vmem:[%s239 + $0x310] sm:$0xff] %v1334
      %1608 = vst.msk [vmem:[%s239 + $0x318] sm:$0xff] %vm1509, %v1336
      %1609 = vst [vmem:[%s239 + $0x320] sm:$0xff] %v1340
      %1610 = vst.msk [vmem:[%s239 + $0x328] sm:$0xff] %vm1509, %v1342
      %1611 = vst [vmem:[%s239 + $0x330] sm:$0xff] %v1344
      %1612 = vst.msk [vmem:[%s239 + $0x338] sm:$0xff] %vm1509, %v1346
      %1613 = vst [vmem:[%s239 + $0x340] sm:$0xff] %v1350
      %1614 = vst.msk [vmem:[%s239 + $0x348] sm:$0xff] %vm1509, %v1352
      %1615 = vst [vmem:[%s239 + $0x350] sm:$0xff] %v1354
      %1616 = vst.msk [vmem:[%s239 + $0x358] sm:$0xff] %vm1509, %v1356
      %1617 = vst [vmem:[%s239 + $0x360] sm:$0xff] %v1360
      %1618 = vst.msk [vmem:[%s239 + $0x368] sm:$0xff] %vm1509, %v1362
      %1619 = vst [vmem:[%s239 + $0x370] sm:$0xff] %v1364
      %1620 = vst.msk [vmem:[%s239 + $0x378] sm:$0xff] %vm1509, %v1366
      %1621 = vst [vmem:[%s239 + $0x380] sm:$0xff] %v1370
      %1622 = vst.msk [vmem:[%s239 + $0x388] sm:$0xff] %vm1509, %v1372
      %1623 = vst [vmem:[%s239 + $0x390] sm:$0xff] %v1374
      %1624 = vst.msk [vmem:[%s239 + $0x398] sm:$0xff] %vm1509, %v1376
      %1625 = vst [vmem:[%s239 + $0x3a0] sm:$0xff] %v1380
      %1626 = vst.msk [vmem:[%s239 + $0x3a8] sm:$0xff] %vm1509, %v1382
      %1627 = vst [vmem:[%s239 + $0x3b0] sm:$0xff] %v1384
      %1628 = vst.msk [vmem:[%s239 + $0x3b8] sm:$0xff] %vm1509, %v1386
      %1629 = vst [vmem:[%s239 + $0x3c0] sm:$0xff] %v1390
      %1630 = vst.msk [vmem:[%s239 + $0x3c8] sm:$0xff] %vm1509, %v1392
      %1631 = vst [vmem:[%s239 + $0x3d0] sm:$0xff] %v1394
      %1632 = vst.msk [vmem:[%s239 + $0x3d8] sm:$0xff] %vm1509, %v1396
      %1633 = vst [vmem:[%s239 + $0x3e0] sm:$0xff] %v1400
      %1634 = vst.msk [vmem:[%s239 + $0x3e8] sm:$0xff] %vm1509, %v1402
      %1635 = vst [vmem:[%s239 + $0x3f0] sm:$0xff] %v1404
      %1636 = vst.msk [vmem:[%s239 + $0x3f8] sm:$0xff] %vm1509, %v1406
      %1637 = vst [vmem:[%s239 + $0x400] sm:$0xff] %v1410
      %1638 = vst.msk [vmem:[%s239 + $0x408] sm:$0xff] %vm1509, %v1412
      %1639 = vst [vmem:[%s239 + $0x410] sm:$0xff] %v1414
      %1640 = vst.msk [vmem:[%s239 + $0x418] sm:$0xff] %vm1509, %v1416
      %1641 = vst [vmem:[%s239 + $0x420] sm:$0xff] %v1420
      %1642 = vst.msk [vmem:[%s239 + $0x428] sm:$0xff] %vm1509, %v1422
      %1643 = vst [vmem:[%s239 + $0x430] sm:$0xff] %v1424
      %1644 = vst.msk [vmem:[%s239 + $0x438] sm:$0xff] %vm1509, %v1426
      %1645 = vst [vmem:[%s239 + $0x440] sm:$0xff] %v1430
      %1646 = vst.msk [vmem:[%s239 + $0x448] sm:$0xff] %vm1509, %v1432
      %1647 = vst [vmem:[%s239 + $0x450] sm:$0xff] %v1434
      %1648 = vst.msk [vmem:[%s239 + $0x458] sm:$0xff] %vm1509, %v1436
      %1649 = vst [vmem:[%s239 + $0x460] sm:$0xff] %v1440
      %1650 = vst.msk [vmem:[%s239 + $0x468] sm:$0xff] %vm1509, %v1442
      %1651 = vst [vmem:[%s239 + $0x470] sm:$0xff] %v1444
      %1652 = vst.msk [vmem:[%s239 + $0x478] sm:$0xff] %vm1509, %v1446
      %1653 = vst [vmem:[%s239 + $0x480] sm:$0xff] %v1450
      %1654 = vst.msk [vmem:[%s239 + $0x488] sm:$0xff] %vm1509, %v1452
      %1655 = vst [vmem:[%s239 + $0x490] sm:$0xff] %v1454
      %1656 = vst.msk [vmem:[%s239 + $0x498] sm:$0xff] %vm1509, %v1456
      %1657 = vst [vmem:[%s239 + $0x4a0] sm:$0xff] %v1460
      %1658 = vst.msk [vmem:[%s239 + $0x4a8] sm:$0xff] %vm1509, %v1462
      %1659 = vst [vmem:[%s239 + $0x4b0] sm:$0xff] %v1464
      %1660 = vst.msk [vmem:[%s239 + $0x4b8] sm:$0xff] %vm1509, %v1466
      %1661 = vst [vmem:[%s239 + $0x4c0] sm:$0xff] %v1470
      %1662 = vst.msk [vmem:[%s239 + $0x4c8] sm:$0xff] %vm1509, %v1472
      %1663 = vst [vmem:[%s239 + $0x4d0] sm:$0xff] %v1474
      %1664 = vst.msk [vmem:[%s239 + $0x4d8] sm:$0xff] %vm1509, %v1476
      %1665 = vst [vmem:[%s239 + $0x4e0] sm:$0xff] %v1480
      %1666 = vst.msk [vmem:[%s239 + $0x4e8] sm:$0xff] %vm1509, %v1482
      %1667 = vst [vmem:[%s239 + $0x4f0] sm:$0xff] %v1484
      %1668 = vst.msk [vmem:[%s239 + $0x4f8] sm:$0xff] %vm1509, %v1486
      %1669 = vst [vmem:[%s239 + $0x500] sm:$0xff] %v1490
      %1670 = vst.msk [vmem:[%s239 + $0x508] sm:$0xff] %vm1509, %v1492
      %1671 = vst [vmem:[%s239 + $0x510] sm:$0xff] %v1494
      %1672 = vst.msk [vmem:[%s239 + $0x518] sm:$0xff] %vm1509, %v1496
      %1673 = vst [vmem:[%s239 + $0x520] sm:$0xff] %v1500
      %1674 = vst.msk [vmem:[%s239 + $0x528] sm:$0xff] %vm1509, %v1502
      %1675 = vst [vmem:[%s239 + $0x530] sm:$0xff] %v1504
      %1676 = vst.msk [vmem:[%s239 + $0x538] sm:$0xff] %vm1509, %v1506
      %s1677 = smul.u32 84, %s18
      %p1678 = scmp.lt.s32.totalorder %s19, 0
      %s1679 = scalar_select %p1678, %s19, 0
      %p1680 = scmp.lt.s32.totalorder %s1677, 167
      %s1681 = scalar_select %p1680, %s1677, 167
      %s1682 = smul.addr %s1681, 2
      %s1683 = smul.addr %s1679, 336
      %s1684 = sadd.s32 %s1682, %s1683
      %s1685 = smul.addr %s1684, 8
      %s1686 = scalar_lea.vmem %s3, %s1685
      // Predicated region
      $region33: #{tpu_custom_call.1} parent=31 // pred_check
        %p1687 = pneg %p124
      $region34: #{tpu_custom_call.1} parent=31 // pred_check_branch
        %1689 = sbr.rel (%p1687) target = $region36
      $region35: #{tpu_custom_call.1} parent=31 // pred_region
        %s1690 = smul.u32 84, %s18
      $region36: #{tpu_custom_call.1} parent=31 // pred_fallthru
        _
    $region32: #{tpu_custom_call.1} parent=5 // pred_fallthru
      _
    %p1691 = scmp.le.s32.totalorder 2, %s9
    // Predicated region
    $region37: #{tpu_custom_call.1} parent=5 // pred_check
      %p1692 = pneg %p1691
    $region38: #{tpu_custom_call.1} parent=5 // pred_check_branch
      %1694 = sbr.rel (%p1692) target = $region40
    $region39: #{tpu_custom_call.1} parent=5 // pred_region
      %s1695 = ssub.s32 %s9, 2
      // Predicated region
      $region41: #{tpu_custom_call.1} parent=39 // pred_check
        %p1696 = pneg %p130
      $region42: #{tpu_custom_call.1} parent=39 // pred_check_branch
        %1698 = sbr.rel (%p1696) target = $region44
      $region43: #{tpu_custom_call.1} parent=39 // pred_region
        %s1699 = smul.u32 84, %s20
        %p1700 = scmp.lt.s32.totalorder %s21, 0
        %s1701 = scalar_select %p1700, %s21, 0
        %p1702 = scmp.lt.s32.totalorder %s1699, 167
        %s1703 = scalar_select %p1702, %s1699, 167
        %s1704 = smul.addr %s1703, 2
        %s1705 = smul.addr %s1701, 336
        %s1706 = sadd.s32 %s1704, %s1705
        %s1707 = smul.addr %s1706, 8
        %s1708 = scalar_lea.vmem %s3, %s1707
      $region44: #{tpu_custom_call.1} parent=39 // pred_fallthru
        _
    $region40: #{tpu_custom_call.1} parent=5 // pred_fallthru
      _
  $region6: #{tpu_custom_call.1} parent=0 // loop_footer
    %s13 = sadd.s32 1, %s9
  $region7: #{tpu_custom_call.1} parent=0 // loop_footer_branch
    %8 = sbr.rel target = $region3
  $region8: #{tpu_custom_call.1} parent=0 // loop_exit
    _

</llo_original>
